<compile_context>
chip_gen: v7x
topology: tpu7x:2x2x1
jax: 0.10.0
libtpu: 0.0.40
codegen_flags: <defaults>
</compile_context>

<pallas_src>
import functools

import jax
import jax.numpy as jnp
from jax import lax
from jax.experimental import pallas as pl
from jax.experimental.pallas import tpu as pltpu

_EPS = 1e-5
_INV_SQRT2 = 0.7071067811865476


def _gelu_exact(v):
    # PyTorch nn.GELU() default = exact erf formulation.
    return 0.5 * v * (1.0 + lax.erf(v * _INV_SQRT2))


def _mixer_block_kernel(
    x_ref,                    # (bt, Np, Dp) f32
    g1_ref, b1_ref,           # (1, Dp)  f32   LayerNorm 1 gamma / beta (zero-padded)
    tw1t_ref, tb1c_ref,       # (Tdp, Np) bf16, (Tdp, 1) f32   token FF layer 1 (pre-transposed)
    tw2t_ref, tb2c_ref,       # (Np, Tdp) bf16, (Np, 1)  f32   token FF layer 2 (pre-transposed)
    g2_ref, b2_ref,           # (1, Dp)  f32   LayerNorm 2 gamma / beta
    cw1_ref, cb1_ref,         # (Dp, Cdp) bf16, (1, Cdp) f32   channel FF layer 1
    cw2_ref, cb2_ref,         # (Cdp, Dp) bf16, (1, Dp)  f32   channel FF layer 2
    o_ref,                    # (bt, Np, Dp) f32
    x1_ref,                   # scratch: (bt, Np, Dp) f32   token-mix residual result
    *, true_d,
):
    f32, bf16 = jnp.float32, jnp.bfloat16
    bt, n_p, d_p = x_ref.shape
    rows = bt * n_p
    pad_cols = d_p - true_d
    inv_d = jnp.float32(1.0 / true_d)     # LayerNorm stats over the TRUE feature dim

    def layernorm(v, g, b):
        # Two-pass LayerNorm (mean, then centred second moment). Padded feature
        # columns (zeros in v and in g/b) each contribute (-mu)^2 to the centred
        # sum; subtract that exactly so stats match the true-D LayerNorm.
        mu = jnp.sum(v, axis=-1, keepdims=True) * inv_d
        c = v - mu
        ss = jnp.sum(c * c, axis=-1, keepdims=True)
        if pad_cols:
            ss = ss - jnp.float32(pad_cols) * (mu * mu)
        scale = lax.rsqrt(ss * inv_d + _EPS) * g
        return c * scale + b

    # Hoisted single loads of the (grid-invariant) token-mix operands.
    g1 = g1_ref[...]
    b1 = b1_ref[...]
    tw1t = tw1t_ref[...]      # (Tdp, Np) bf16
    tb1c = tb1c_ref[...]      # (Tdp, 1)  f32
    tw2t = tw2t_ref[...]      # (Np, Tdp) bf16
    tb2c = tb2c_ref[...]      # (Np, 1)   f32

    if pad_cols:
        col_mask = (lax.broadcasted_iota(jnp.int32, (1, d_p), 1) < true_d).astype(f32)

    # ---------------- token-mix branch ----------------
    # Per-batch: both matmuls are canonical (contract lhs last dim with rhs first
    # dim) so no XLU transposes are emitted; each x1 slice is written straight to
    # VMEM scratch (bounded live ranges, no list/concatenate copies).
    def token_body(b, carry):
        xb = x_ref[b]                                                 # (Np, Dp) f32
        y1 = layernorm(xb, g1, b1).astype(bf16)                       # (Np, Dp)
        # h[t, d] = sum_n tw1[n, t] * y1[n, d] + tb1[t]
        h = jnp.dot(tw1t, y1, preferred_element_type=f32)             # (Tdp, Dp)
        h = _gelu_exact(h + tb1c).astype(bf16)
        # t[n, d] = sum_t tw2[t, n] * h[t, d] + tb2[n]
        t_nd = jnp.dot(tw2t, h, preferred_element_type=f32) + tb2c    # (Np, Dp)
        if pad_cols:
            # Padded feature columns pick up gelu(tb1) garbage; zero them so they
            # cannot pollute LN2 or the output.
            t_nd = t_nd * col_mask
        x1_ref[b] = xb + t_nd
        return carry

    lax.fori_loop(0, bt, token_body, 0, unroll=min(bt, 8))

    # ---------------- channel-mix branch ----------------
    # Row-wise: merge batch into the sublane dim and process the whole slab at once.
    x1 = x1_ref[...].reshape(rows, d_p)
    y2 = layernorm(x1, g2_ref[...], b2_ref[...]).astype(bf16)
    h2 = jnp.dot(y2, cw1_ref[...], preferred_element_type=f32) + cb1_ref[...]   # (rows, Cdp)
    h2 = _gelu_exact(h2).astype(bf16)
    c = jnp.dot(h2, cw2_ref[...], preferred_element_type=f32) + cb2_ref[...]    # (rows, Dp)

    o_ref[...] = (x1 + c).reshape(bt, n_p, d_p).astype(o_ref.dtype)


def _round_up(v, m):
    return (v + m - 1) // m * m


def _pad2(a, rows, cols, dtype):
    a = jnp.asarray(a, dtype)
    return jnp.pad(a, ((0, rows - a.shape[0]), (0, cols - a.shape[1])))


def _vmem_capacity_bytes():
    try:
        return int(pltpu.get_tpu_info().vmem_capacity_bytes)
    except Exception:
        return 64 * 1024 * 1024   # conservative default (v7x per-core VMEM)


def prepare_mixer_params(params):
    """One-time pad / bf16-cast / transpose of the MixerBlock weights.

    Hoisted out of the per-forward path so there is no recurring HBM pad/convert
    traffic before every kernel launch.
    """
    f32, bf16 = jnp.float32, jnp.bfloat16
    N, Td = params["tw1"].shape
    D, Cd = params["cw1"].shape
    Np, Dp = _round_up(N, 8), _round_up(D, 128)
    Tdp, Cdp = _round_up(Td, 128), _round_up(Cd, 128)

    g1 = _pad2(params["g1"], 1, Dp, f32)
    b1 = _pad2(params["b1"], 1, Dp, f32)
    g2 = _pad2(params["g2"], 1, Dp, f32)
    b2 = _pad2(params["b2"], 1, Dp, f32)
    # Token-mix weights pre-transposed so both in-kernel matmuls are canonical
    # MXU matmuls (no vxpose). Zero padding along Np / Tdp keeps padded rows clean.
    tw1t = _pad2(params["tw1"], Np, Tdp, bf16).T               # (Tdp, Np)
    tb1c = _pad2(params["tb1"], 1, Tdp, f32).reshape(Tdp, 1)   # column bias
    tw2t = _pad2(params["tw2"], Tdp, Np, bf16).T               # (Np, Tdp)
    tb2c = _pad2(params["tb2"], 1, Np, f32).reshape(Np, 1)     # column bias
    cw1 = _pad2(params["cw1"], Dp, Cdp, bf16)
    cb1 = _pad2(params["cb1"], 1, Cdp, f32)
    cw2 = _pad2(params["cw2"], Cdp, Dp, bf16)
    cb2 = _pad2(params["cb2"], 1, Dp, f32)

    weights = (g1, b1, tw1t, tb1c, tw2t, tb2c, g2, b2, cw1, cb1, cw2, cb2)
    dims = dict(N=N, D=D, Td=Td, Cd=Cd, Np=Np, Dp=Dp, Tdp=Tdp, Cdp=Cdp)
    return {"weights": weights, "dims": dims}


def mixer_block(x, prep):
    """Fused MixerBlock forward. x: (B, N, D) float32; prep from prepare_mixer_params."""
    B, N, D = x.shape
    dims = prep["dims"]
    assert (N, D) == (dims["N"], dims["D"]), "x shape does not match prepared params"
    Np, Dp, Tdp, Cdp = dims["Np"], dims["Dp"], dims["Tdp"], dims["Cdp"]
    weights = prep["weights"]
    f32 = jnp.float32

    vmem_cap = _vmem_capacity_bytes()

    # Rows per grid step: bigger slabs amortize the ~0.35us per-step overhead but
    # must fit VMEM; allow larger slabs on 128 MiB parts (v5e/v6e), tighter on 64 MiB (v7x).
    row_cap = 512 if vmem_cap >= (96 << 20) else 256
    per_row_tmp = 4 * (Cdp + Tdp + 4 * Dp)              # f32 temporaries per slab row
    row_cap = max(Np, min(row_cap, (vmem_cap // 4) // max(per_row_tmp, 1)))

    # bt = largest divisor of B with bt*Np <= row_cap that still leaves >= 2 grid
    # steps (keeps both v7x TensorCores busy and gives the DMA pipeline >= 2 stages).
    bt = 1
    for cand in range(1, B + 1):
        if B % cand or cand * Np > row_cap:
            continue
        if B >= 2 and B // cand < 2:
            continue
        bt = cand
    grid = (B // bt,)
    rows = bt * Np

    # Only pad / slice the activation tensor when the shape actually needs it
    # (avoids a full HBM round-trip for already-aligned D, e.g. 512 / 768).
    needs_pad = (Np != N) or (Dp != D)
    xp = (jnp.pad(x.astype(f32), ((0, 0), (0, Np - N), (0, Dp - D)))
          if needs_pad else x.astype(f32))

    weight_bytes = sum(int(w.size) * w.dtype.itemsize for w in weights)
    block_bytes = rows * Dp * 4
    need = 2 * weight_bytes + 4 * block_bytes + rows * per_row_tmp + (4 << 20)
    vmem_limit = int(min(max(need, 32 << 20), vmem_cap - (8 << 20)))

    flops = 4 * B * Np * Dp * (Tdp + Cdp)
    transcendentals = B * (Dp * Tdp + Np * Cdp)
    bytes_accessed = 2 * B * Np * Dp * 4 + weight_bytes

    def build_call(single_buffer_consts):
        def const_spec(shape):
            index_map = lambda i, _nd=len(shape): (0,) * _nd
            if single_buffer_consts:
                # Constant index map -> double buffering is pure VMEM waste.
                return pl.BlockSpec(shape, index_map, pipeline_mode=pl.Buffered(1))
            return pl.BlockSpec(shape, index_map)

        in_specs = [pl.BlockSpec((bt, Np, Dp), lambda i: (i, 0, 0))]
        in_specs += [const_spec(w.shape) for w in weights]

        return pl.pallas_call(
            functools.partial(_mixer_block_kernel, true_d=D),
            out_shape=jax.ShapeDtypeStruct((B, Np, Dp), x.dtype),
            grid_spec=pltpu.PrefetchScalarGridSpec(
                num_scalar_prefetch=0,
                grid=grid,
                in_specs=in_specs,
                out_specs=pl.BlockSpec((bt, Np, Dp), lambda i: (i, 0, 0)),
                scratch_shapes=[pltpu.VMEM((bt, Np, Dp), jnp.float32)],
            ),
            compiler_params=pltpu.CompilerParams(
                dimension_semantics=("parallel",),
                vmem_limit_bytes=vmem_limit,
            ),
            cost_estimate=pl.CostEstimate(
                flops=int(flops),
                transcendentals=int(transcendentals),
                bytes_accessed=int(bytes_accessed),
            ),
        )

    single = hasattr(pl, "Buffered")
    try:
        out_p = build_call(single)(xp, *weights)
    except Exception:
        if not single:
            raise
        # Fallback: older jax without single-buffered pipeline_mode support.
        out_p = build_call(False)(xp, *weights)

    return out_p[:, :N, :D] if needs_pad else out_p


def mixer_block_ref(x, p):
    """Pure-JAX f32 reference matching the PyTorch module exactly."""
    def ln(v, g, b):
        mu = jnp.mean(v, axis=-1, keepdims=True)
        var = jnp.mean((v - mu) ** 2, axis=-1, keepdims=True)
        return (v - mu) * lax.rsqrt(var + _EPS) * g + b

    y1 = ln(x, p["g1"][0], p["b1"][0])
    yt = jnp.swapaxes(y1, 1, 2)                       # (B, D, N)
    h = _gelu_exact(yt @ p["tw1"] + p["tb1"][0])
    t = h @ p["tw2"] + p["tb2"][0]
    x1 = x + jnp.swapaxes(t, 1, 2)

    y2 = ln(x1, p["g2"][0], p["b2"][0])
    h2 = _gelu_exact(y2 @ p["cw1"] + p["cb1"][0])
    c = h2 @ p["cw2"] + p["cb2"][0]
    return x1 + c


def make_params(key, dim, num_patch, token_dim, channel_dim):
    ks = jax.random.split(key, 8)
    s = lambda fan_in: 1.0 / jnp.sqrt(fan_in)
    return {
        "g1": jnp.ones((1, dim), jnp.float32),
        "b1": jnp.zeros((1, dim), jnp.float32),
        "tw1": jax.random.normal(ks[0], (num_patch, token_dim), jnp.float32) * s(num_patch),
        "tb1": jax.random.normal(ks[1], (1, token_dim), jnp.float32) * 0.01,
        "tw2": jax.random.normal(ks[2], (token_dim, num_patch), jnp.float32) * s(token_dim),
        "tb2": jax.random.normal(ks[3], (1, num_patch), jnp.float32) * 0.01,
        "g2": jnp.ones((1, dim), jnp.float32),
        "b2": jnp.zeros((1, dim), jnp.float32),
        "cw1": jax.random.normal(ks[4], (dim, channel_dim), jnp.float32) * s(dim),
        "cb1": jax.random.normal(ks[5], (1, channel_dim), jnp.float32) * 0.01,
        "cw2": jax.random.normal(ks[6], (channel_dim, dim), jnp.float32) * s(channel_dim),
        "cb2": jax.random.normal(ks[7], (1, dim), jnp.float32) * 0.01,
    }


if __name__ == "__main__":
    # Small shapes consistent with the module: x is (batch, num_patch, dim).
    B, N, D = 2, 8, 32          # batch, num_patch, dim
    token_dim, channel_dim = 16, 64

    key = jax.random.PRNGKey(0)
    kx, kp = jax.random.split(key)
    x = jax.random.normal(kx, (B, N, D), jnp.float32)
    params = make_params(kp, D, N, token_dim, channel_dim)

    prep = prepare_mixer_params(params)        # one-time weight pad/cast/transpose
    out = jax.block_until_ready(mixer_block(x, prep))

    ref = mixer_block_ref(x, params)
    assert out.shape == (B, N, D)
    # bf16 matmul operands (f32 accumulation) => ~1e-2-level deviation vs the
    # exact-f32 reference; tolerance loosened accordingly.
    max_err = float(jnp.max(jnp.abs(out - ref)))
    assert jnp.allclose(out, ref, atol=7.5e-2, rtol=5e-2), max_err

    print("KERNEL_OK")
</pallas_src>

<mosaic_0001>
module attributes {stable_mosaic.version = 11 : i64} {
  func.func @_mixer_block_kernel(%arg0: i32, %arg1: memref<1x8x128xf32, #tpu.memory_space<vmem>>, %arg2: memref<1x128xf32, #tpu.memory_space<vmem>>, %arg3: memref<1x128xf32, #tpu.memory_space<vmem>>, %arg4: memref<128x8xbf16, #tpu.memory_space<vmem>>, %arg5: memref<128x1xf32, #tpu.memory_space<vmem>>, %arg6: memref<8x128xbf16, #tpu.memory_space<vmem>>, %arg7: memref<8x1xf32, #tpu.memory_space<vmem>>, %arg8: memref<1x128xf32, #tpu.memory_space<vmem>>, %arg9: memref<1x128xf32, #tpu.memory_space<vmem>>, %arg10: memref<128x128xbf16, #tpu.memory_space<vmem>>, %arg11: memref<1x128xf32, #tpu.memory_space<vmem>>, %arg12: memref<128x128xbf16, #tpu.memory_space<vmem>>, %arg13: memref<1x128xf32, #tpu.memory_space<vmem>>, %arg14: memref<1x8x128xf32, #tpu.memory_space<vmem>>, %arg15: memref<1x8x128xf32, #tpu.memory_space<vmem>>) attributes {dimension_semantics = [#tpu.dimension_semantics<parallel>], iteration_bounds = array<i64: 2>, scalar_prefetch = 0 : i64, scratch_operands = 1 : i64, tpu.core_type = #tpu.core_type<tc>, window_params = [{transform_indices = @transform_0, window_bounds = array<i64: 1, 8, 128>}, {pipeline_mode = #tpu.pipeline_mode<synchronous>, transform_indices = @transform_1, window_bounds = array<i64: 1, 128>}, {pipeline_mode = #tpu.pipeline_mode<synchronous>, transform_indices = @transform_2, window_bounds = array<i64: 1, 128>}, {pipeline_mode = #tpu.pipeline_mode<synchronous>, transform_indices = @transform_3, window_bounds = array<i64: 128, 8>}, {pipeline_mode = #tpu.pipeline_mode<synchronous>, transform_indices = @transform_4, window_bounds = array<i64: 128, 1>}, {pipeline_mode = #tpu.pipeline_mode<synchronous>, transform_indices = @transform_5, window_bounds = array<i64: 8, 128>}, {pipeline_mode = #tpu.pipeline_mode<synchronous>, transform_indices = @transform_6, window_bounds = array<i64: 8, 1>}, {pipeline_mode = #tpu.pipeline_mode<synchronous>, transform_indices = @transform_7, window_bounds = array<i64: 1, 128>}, {pipeline_mode = #tpu.pipeline_mode<synchronous>, transform_indices = @transform_8, window_bounds = array<i64: 1, 128>}, {pipeline_mode = #tpu.pipeline_mode<synchronous>, transform_indices = @transform_9, window_bounds = array<i64: 128, 128>}, {pipeline_mode = #tpu.pipeline_mode<synchronous>, transform_indices = @transform_10, window_bounds = array<i64: 1, 128>}, {pipeline_mode = #tpu.pipeline_mode<synchronous>, transform_indices = @transform_11, window_bounds = array<i64: 128, 128>}, {pipeline_mode = #tpu.pipeline_mode<synchronous>, transform_indices = @transform_12, window_bounds = array<i64: 1, 128>}, {transform_indices = @transform_13, window_bounds = array<i64: 1, 8, 128>}]} {
    %c0 = arith.constant 0 : index
    %c0_0 = arith.constant 0 : index
    %0 = vector.load %arg2[%c0, %c0_0] : memref<1x128xf32, #tpu.memory_space<vmem>>, vector<1x128xf32>
    %c0_1 = arith.constant 0 : index
    %c0_2 = arith.constant 0 : index
    %1 = vector.load %arg3[%c0_1, %c0_2] : memref<1x128xf32, #tpu.memory_space<vmem>>, vector<1x128xf32>
    %c0_3 = arith.constant 0 : index
    %c0_4 = arith.constant 0 : index
    %2 = vector.load %arg4[%c0_3, %c0_4] : memref<128x8xbf16, #tpu.memory_space<vmem>>, vector<128x8xbf16>
    %c0_5 = arith.constant 0 : index
    %c0_6 = arith.constant 0 : index
    %3 = vector.load %arg5[%c0_5, %c0_6] : memref<128x1xf32, #tpu.memory_space<vmem>>, vector<128x1xf32>
    %c0_7 = arith.constant 0 : index
    %c0_8 = arith.constant 0 : index
    %4 = vector.load %arg6[%c0_7, %c0_8] : memref<8x128xbf16, #tpu.memory_space<vmem>>, vector<8x128xbf16>
    %c0_9 = arith.constant 0 : index
    %c0_10 = arith.constant 0 : index
    %5 = vector.load %arg7[%c0_9, %c0_10] : memref<8x1xf32, #tpu.memory_space<vmem>>, vector<8x1xf32>
    %6 = tpu.iota {dimensions = array<i32: 1>} : vector<1x128xi32>
    %c32_i32 = arith.constant 32 : i32
    %7 = vector.broadcast %c32_i32 : i32 to vector<1x128xi32>
    %8 = arith.cmpi slt, %6, %7 : vector<1x128xi32>
    %9 = arith.extui %8 : vector<1x128xi1> to vector<1x128xi32>
    %10 = arith.sitofp %9 : vector<1x128xi32> to vector<1x128xf32>
    %cst = arith.constant 3.125000e-02 : f32
    %c0_i32 = arith.constant 0 : i32
    %11 = arith.index_cast %c0_i32 : i32 to index
    %c0_11 = arith.constant 0 : index
    %c0_12 = arith.constant 0 : index
    %12 = vector.load %arg1[%11, %c0_11, %c0_12] : memref<1x8x128xf32, #tpu.memory_space<vmem>>, vector<1x8x128xf32>
    %13 = vector.shape_cast %12 : vector<1x8x128xf32> to vector<8x128xf32>
    %cst_13 = arith.constant dense<0.000000e+00> : vector<8xf32>
    %14 = vector.multi_reduction <add>, %13, %cst_13 [1] : vector<8x128xf32> to vector<8xf32>
    %15 = vector.shape_cast %14 : vector<8xf32> to vector<8x1xf32>
    %16 = vector.broadcast %cst : f32 to vector<8x1xf32>
    %17 = arith.mulf %15, %16 : vector<8x1xf32>
    %18 = vector.broadcast %17 : vector<8x1xf32> to vector<8x128xf32>
    %19 = arith.subf %13, %18 : vector<8x128xf32>
    %20 = arith.mulf %19, %19 : vector<8x128xf32>
    %cst_14 = arith.constant dense<0.000000e+00> : vector<8xf32>
    %21 = vector.multi_reduction <add>, %20, %cst_14 [1] : vector<8x128xf32> to vector<8xf32>
    %22 = vector.shape_cast %21 : vector<8xf32> to vector<8x1xf32>
    %23 = arith.mulf %17, %17 : vector<8x1xf32>
    %cst_15 = arith.constant 9.600000e+01 : f32
    %24 = vector.broadcast %cst_15 : f32 to vector<8x1xf32>
    %25 = arith.mulf %24, %23 : vector<8x1xf32>
    %26 = arith.subf %22, %25 : vector<8x1xf32>
    %27 = vector.broadcast %cst : f32 to vector<8x1xf32>
    %28 = arith.mulf %26, %27 : vector<8x1xf32>
    %cst_16 = arith.constant 9.99999974E-6 : f32
    %29 = vector.broadcast %cst_16 : f32 to vector<8x1xf32>
    %30 = arith.addf %28, %29 : vector<8x1xf32>
    %31 = math.rsqrt %30 : vector<8x1xf32>
    %32 = vector.broadcast %31 : vector<8x1xf32> to vector<8x128xf32>
    %33 = vector.broadcast %0 : vector<1x128xf32> to vector<8x128xf32>
    %34 = arith.mulf %32, %33 : vector<8x128xf32>
    %35 = arith.mulf %19, %34 : vector<8x128xf32>
    %36 = vector.broadcast %1 : vector<1x128xf32> to vector<8x128xf32>
    %37 = arith.addf %35, %36 : vector<8x128xf32>
    %38 = arith.truncf %37 : vector<8x128xf32> to vector<8x128xbf16>
    %cst_17 = arith.constant dense<0.000000e+00> : vector<128x128xf32>
    %39 = tpu.matmul %2, %38, %cst_17 {dimension_numbers = #tpu.dot_dimension_numbers<[1], [0], [0], [1], [0, 0, 1, 1], [], []>} : vector<128x8xbf16>, vector<8x128xbf16>, vector<128x128xf32> -> vector<128x128xf32>
    %40 = vector.broadcast %3 : vector<128x1xf32> to vector<128x128xf32>
    %41 = arith.addf %39, %40 : vector<128x128xf32>
    %cst_18 = arith.constant 5.000000e-01 : f32
    %42 = vector.broadcast %cst_18 : f32 to vector<128x128xf32>
    %43 = arith.mulf %42, %41 : vector<128x128xf32>
    %cst_19 = arith.constant 0.707106769 : f32
    %44 = vector.broadcast %cst_19 : f32 to vector<128x128xf32>
    %45 = arith.mulf %41, %44 : vector<128x128xf32>
    %46 = math.erf %45 : vector<128x128xf32>
    %cst_20 = arith.constant 1.000000e+00 : f32
    %47 = vector.broadcast %cst_20 : f32 to vector<128x128xf32>
    %48 = arith.addf %47, %46 : vector<128x128xf32>
    %49 = arith.mulf %43, %48 : vector<128x128xf32>
    %50 = arith.truncf %49 : vector<128x128xf32> to vector<128x128xbf16>
    %cst_21 = arith.constant dense<0.000000e+00> : vector<8x128xf32>
    %51 = tpu.matmul %4, %50, %cst_21 {dimension_numbers = #tpu.dot_dimension_numbers<[1], [0], [0], [1], [0, 0, 1, 1], [], []>} : vector<8x128xbf16>, vector<128x128xbf16>, vector<8x128xf32> -> vector<8x128xf32>
    %52 = vector.broadcast %5 : vector<8x1xf32> to vector<8x128xf32>
    %53 = arith.addf %51, %52 : vector<8x128xf32>
    %54 = vector.broadcast %10 : vector<1x128xf32> to vector<8x128xf32>
    %55 = arith.mulf %53, %54 : vector<8x128xf32>
    %56 = arith.addf %13, %55 : vector<8x128xf32>
    %57 = arith.index_cast %c0_i32 : i32 to index
    %c0_22 = arith.constant 0 : index
    %c0_23 = arith.constant 0 : index
    %58 = vector.load %arg15[%57, %c0_22, %c0_23] : memref<1x8x128xf32, #tpu.memory_space<vmem>>, vector<1x8x128xf32>
    %59 = vector.shape_cast %58 : vector<1x8x128xf32> to vector<8x128xf32>
    %60 = vector.shape_cast %56 : vector<8x128xf32> to vector<1x8x128xf32>
    tpu.vector_store %arg15[%57, %c0_22, %c0_23], %60 {strides = array<i32>} : memref<1x8x128xf32, #tpu.memory_space<vmem>>, vector<1x8x128xf32>,
    %c1_i32 = arith.constant 1 : i32
    %c0_24 = arith.constant 0 : index
    %c0_25 = arith.constant 0 : index
    %c0_26 = arith.constant 0 : index
    %61 = vector.load %arg15[%c0_24, %c0_25, %c0_26] : memref<1x8x128xf32, #tpu.memory_space<vmem>>, vector<1x8x128xf32>
    %62 = vector.shape_cast %61 : vector<1x8x128xf32> to vector<8x128xf32>
    %c0_27 = arith.constant 0 : index
    %c0_28 = arith.constant 0 : index
    %63 = vector.load %arg8[%c0_27, %c0_28] : memref<1x128xf32, #tpu.memory_space<vmem>>, vector<1x128xf32>
    %c0_29 = arith.constant 0 : index
    %c0_30 = arith.constant 0 : index
    %64 = vector.load %arg9[%c0_29, %c0_30] : memref<1x128xf32, #tpu.memory_space<vmem>>, vector<1x128xf32>
    %cst_31 = arith.constant dense<0.000000e+00> : vector<8xf32>
    %65 = vector.multi_reduction <add>, %62, %cst_31 [1] : vector<8x128xf32> to vector<8xf32>
    %66 = vector.shape_cast %65 : vector<8xf32> to vector<8x1xf32>
    %cst_32 = arith.constant 3.125000e-02 : f32
    %67 = vector.broadcast %cst_32 : f32 to vector<8x1xf32>
    %68 = arith.mulf %66, %67 : vector<8x1xf32>
    %69 = vector.broadcast %68 : vector<8x1xf32> to vector<8x128xf32>
    %70 = arith.subf %62, %69 : vector<8x128xf32>
    %71 = arith.mulf %70, %70 : vector<8x128xf32>
    %cst_33 = arith.constant dense<0.000000e+00> : vector<8xf32>
    %72 = vector.multi_reduction <add>, %71, %cst_33 [1] : vector<8x128xf32> to vector<8xf32>
    %73 = vector.shape_cast %72 : vector<8xf32> to vector<8x1xf32>
    %74 = arith.mulf %68, %68 : vector<8x1xf32>
    %cst_34 = arith.constant 9.600000e+01 : f32
    %75 = vector.broadcast %cst_34 : f32 to vector<8x1xf32>
    %76 = arith.mulf %75, %74 : vector<8x1xf32>
    %77 = arith.subf %73, %76 : vector<8x1xf32>
    %cst_35 = arith.constant 3.125000e-02 : f32
    %78 = vector.broadcast %cst_35 : f32 to vector<8x1xf32>
    %79 = arith.mulf %77, %78 : vector<8x1xf32>
    %cst_36 = arith.constant 9.99999974E-6 : f32
    %80 = vector.broadcast %cst_36 : f32 to vector<8x1xf32>
    %81 = arith.addf %79, %80 : vector<8x1xf32>
    %82 = math.rsqrt %81 : vector<8x1xf32>
    %83 = vector.broadcast %82 : vector<8x1xf32> to vector<8x128xf32>
    %84 = vector.broadcast %63 : vector<1x128xf32> to vector<8x128xf32>
    %85 = arith.mulf %83, %84 : vector<8x128xf32>
    %86 = arith.mulf %70, %85 : vector<8x128xf32>
    %87 = vector.broadcast %64 : vector<1x128xf32> to vector<8x128xf32>
    %88 = arith.addf %86, %87 : vector<8x128xf32>
    %89 = arith.truncf %88 : vector<8x128xf32> to vector<8x128xbf16>
    %c0_37 = arith.constant 0 : index
    %c0_38 = arith.constant 0 : index
    %90 = vector.load %arg10[%c0_37, %c0_38] : memref<128x128xbf16, #tpu.memory_space<vmem>>, vector<128x128xbf16>
    %cst_39 = arith.constant dense<0.000000e+00> : vector<8x128xf32>
    %91 = tpu.matmul %89, %90, %cst_39 {dimension_numbers = #tpu.dot_dimension_numbers<[1], [0], [0], [1], [0, 0, 1, 1], [], []>} : vector<8x128xbf16>, vector<128x128xbf16>, vector<8x128xf32> -> vector<8x128xf32>
    %c0_40 = arith.constant 0 : index
    %c0_41 = arith.constant 0 : index
    %92 = vector.load %arg11[%c0_40, %c0_41] : memref<1x128xf32, #tpu.memory_space<vmem>>, vector<1x128xf32>
    %93 = vector.broadcast %92 : vector<1x128xf32> to vector<8x128xf32>
    %94 = arith.addf %91, %93 : vector<8x128xf32>
    %cst_42 = arith.constant 5.000000e-01 : f32
    %95 = vector.broadcast %cst_42 : f32 to vector<8x128xf32>
    %96 = arith.mulf %95, %94 : vector<8x128xf32>
    %cst_43 = arith.constant 0.707106769 : f32
    %97 = vector.broadcast %cst_43 : f32 to vector<8x128xf32>
    %98 = arith.mulf %94, %97 : vector<8x128xf32>
    %99 = math.erf %98 : vector<8x128xf32>
    %cst_44 = arith.constant 1.000000e+00 : f32
    %100 = vector.broadcast %cst_44 : f32 to vector<8x128xf32>
    %101 = arith.addf %100, %99 : vector<8x128xf32>
    %102 = arith.mulf %96, %101 : vector<8x128xf32>
    %103 = arith.truncf %102 : vector<8x128xf32> to vector<8x128xbf16>
    %c0_45 = arith.constant 0 : index
    %c0_46 = arith.constant 0 : index
    %104 = vector.load %arg12[%c0_45, %c0_46] : memref<128x128xbf16, #tpu.memory_space<vmem>>, vector<128x128xbf16>
    %cst_47 = arith.constant dense<0.000000e+00> : vector<8x128xf32>
    %105 = tpu.matmul %103, %104, %cst_47 {dimension_numbers = #tpu.dot_dimension_numbers<[1], [0], [0], [1], [0, 0, 1, 1], [], []>} : vector<8x128xbf16>, vector<128x128xbf16>, vector<8x128xf32> -> vector<8x128xf32>
    %c0_48 = arith.constant 0 : index
    %c0_49 = arith.constant 0 : index
    %106 = vector.load %arg13[%c0_48, %c0_49] : memref<1x128xf32, #tpu.memory_space<vmem>>, vector<1x128xf32>
    %107 = vector.broadcast %106 : vector<1x128xf32> to vector<8x128xf32>
    %108 = arith.addf %105, %107 : vector<8x128xf32>
    %109 = arith.addf %62, %108 : vector<8x128xf32>
    %110 = vector.shape_cast %109 : vector<8x128xf32> to vector<1x8x128xf32>
    %c0_50 = arith.constant 0 : index
    %c0_51 = arith.constant 0 : index
    %c0_52 = arith.constant 0 : index
    %111 = vector.load %arg14[%c0_50, %c0_51, %c0_52] : memref<1x8x128xf32, #tpu.memory_space<vmem>>, vector<1x8x128xf32>
    tpu.vector_store %arg14[%c0_50, %c0_51, %c0_52], %110 {strides = array<i32>} : memref<1x8x128xf32, #tpu.memory_space<vmem>>, vector<1x8x128xf32>,
    return
  }
  func.func @transform_0(%arg0: i32) -> (i32, i32, i32) {
    %c0_i32 = arith.constant 0 : i32
    %c0_i32_0 = arith.constant 0 : i32
    %c0_i32_1 = arith.constant 0 : i32
    return %arg0, %c0_i32, %c0_i32_0 : i32, i32, i32
  }
  func.func @transform_1(%arg0: i32) -> (i32, i32) {
    %c0_i32 = arith.constant 0 : i32
    %c0_i32_0 = arith.constant 0 : i32
    %c0_i32_1 = arith.constant 0 : i32
    return %c0_i32, %c0_i32_0 : i32, i32
  }
  func.func @transform_2(%arg0: i32) -> (i32, i32) {
    %c0_i32 = arith.constant 0 : i32
    %c0_i32_0 = arith.constant 0 : i32
    %c0_i32_1 = arith.constant 0 : i32
    return %c0_i32, %c0_i32_0 : i32, i32
  }
  func.func @transform_3(%arg0: i32) -> (i32, i32) {
    %c0_i32 = arith.constant 0 : i32
    %c0_i32_0 = arith.constant 0 : i32
    %c0_i32_1 = arith.constant 0 : i32
    return %c0_i32, %c0_i32_0 : i32, i32
  }
  func.func @transform_4(%arg0: i32) -> (i32, i32) {
    %c0_i32 = arith.constant 0 : i32
    %c0_i32_0 = arith.constant 0 : i32
    %c0_i32_1 = arith.constant 0 : i32
    return %c0_i32, %c0_i32_0 : i32, i32
  }
  func.func @transform_5(%arg0: i32) -> (i32, i32) {
    %c0_i32 = arith.constant 0 : i32
    %c0_i32_0 = arith.constant 0 : i32
    %c0_i32_1 = arith.constant 0 : i32
    return %c0_i32, %c0_i32_0 : i32, i32
  }
  func.func @transform_6(%arg0: i32) -> (i32, i32) {
    %c0_i32 = arith.constant 0 : i32
    %c0_i32_0 = arith.constant 0 : i32
    %c0_i32_1 = arith.constant 0 : i32
    return %c0_i32, %c0_i32_0 : i32, i32
  }
  func.func @transform_7(%arg0: i32) -> (i32, i32) {
    %c0_i32 = arith.constant 0 : i32
    %c0_i32_0 = arith.constant 0 : i32
    %c0_i32_1 = arith.constant 0 : i32
    return %c0_i32, %c0_i32_0 : i32, i32
  }
  func.func @transform_8(%arg0: i32) -> (i32, i32) {
    %c0_i32 = arith.constant 0 : i32
    %c0_i32_0 = arith.constant 0 : i32
    %c0_i32_1 = arith.constant 0 : i32
    return %c0_i32, %c0_i32_0 : i32, i32
  }
  func.func @transform_9(%arg0: i32) -> (i32, i32) {
    %c0_i32 = arith.constant 0 : i32
    %c0_i32_0 = arith.constant 0 : i32
    %c0_i32_1 = arith.constant 0 : i32
    return %c0_i32, %c0_i32_0 : i32, i32
  }
  func.func @transform_10(%arg0: i32) -> (i32, i32) {
    %c0_i32 = arith.constant 0 : i32
    %c0_i32_0 = arith.constant 0 : i32
    %c0_i32_1 = arith.constant 0 : i32
    return %c0_i32, %c0_i32_0 : i32, i32
  }
  func.func @transform_11(%arg0: i32) -> (i32, i32) {
    %c0_i32 = arith.constant 0 : i32
    %c0_i32_0 = arith.constant 0 : i32
    %c0_i32_1 = arith.constant 0 : i32
    return %c0_i32, %c0_i32_0 : i32, i32
  }
  func.func @transform_12(%arg0: i32) -> (i32, i32) {
    %c0_i32 = arith.constant 0 : i32
    %c0_i32_0 = arith.constant 0 : i32
    %c0_i32_1 = arith.constant 0 : i32
    return %c0_i32, %c0_i32_0 : i32, i32
  }
  func.func @transform_13(%arg0: i32) -> (i32, i32, i32) {
    %c0_i32 = arith.constant 0 : i32
    %c0_i32_0 = arith.constant 0 : i32
    %c0_i32_1 = arith.constant 0 : i32
    return %arg0, %c0_i32, %c0_i32_0 : i32, i32, i32
  }
}

module attributes {stable_mosaic.version = 11 : i64} {
  func.func @_mixer_block_kernel(%arg0: i32, %arg1: memref<1x8x128xf32, #tpu.memory_space<vmem>>, %arg2: memref<1x128xf32, #tpu.memory_space<vmem>>, %arg3: memref<1x128xf32, #tpu.memory_space<vmem>>, %arg4: memref<128x8xbf16, #tpu.memory_space<vmem>>, %arg5: memref<128x1xf32, #tpu.memory_space<vmem>>, %arg6: memref<8x128xbf16, #tpu.memory_space<vmem>>, %arg7: memref<8x1xf32, #tpu.memory_space<vmem>>, %arg8: memref<1x128xf32, #tpu.memory_space<vmem>>, %arg9: memref<1x128xf32, #tpu.memory_space<vmem>>, %arg10: memref<128x128xbf16, #tpu.memory_space<vmem>>, %arg11: memref<1x128xf32, #tpu.memory_space<vmem>>, %arg12: memref<128x128xbf16, #tpu.memory_space<vmem>>, %arg13: memref<1x128xf32, #tpu.memory_space<vmem>>, %arg14: memref<1x8x128xf32, #tpu.memory_space<vmem>>, %arg15: memref<1x8x128xf32, #tpu.memory_space<vmem>>) attributes {dimension_semantics = [#tpu.dimension_semantics<parallel>], iteration_bounds = array<i64: 2>, scalar_prefetch = 0 : i64, scratch_operands = 1 : i64, tpu.core_type = #tpu.core_type<tc>, window_params = [{transform_indices = @transform_0, window_bounds = array<i64: 1, 8, 128>}, {pipeline_mode = #tpu.pipeline_mode<synchronous>, transform_indices = @transform_1, window_bounds = array<i64: 1, 128>}, {pipeline_mode = #tpu.pipeline_mode<synchronous>, transform_indices = @transform_2, window_bounds = array<i64: 1, 128>}, {pipeline_mode = #tpu.pipeline_mode<synchronous>, transform_indices = @transform_3, window_bounds = array<i64: 128, 8>}, {pipeline_mode = #tpu.pipeline_mode<synchronous>, transform_indices = @transform_4, window_bounds = array<i64: 128, 1>}, {pipeline_mode = #tpu.pipeline_mode<synchronous>, transform_indices = @transform_5, window_bounds = array<i64: 8, 128>}, {pipeline_mode = #tpu.pipeline_mode<synchronous>, transform_indices = @transform_6, window_bounds = array<i64: 8, 1>}, {pipeline_mode = #tpu.pipeline_mode<synchronous>, transform_indices = @transform_7, window_bounds = array<i64: 1, 128>}, {pipeline_mode = #tpu.pipeline_mode<synchronous>, transform_indices = @transform_8, window_bounds = array<i64: 1, 128>}, {pipeline_mode = #tpu.pipeline_mode<synchronous>, transform_indices = @transform_9, window_bounds = array<i64: 128, 128>}, {pipeline_mode = #tpu.pipeline_mode<synchronous>, transform_indices = @transform_10, window_bounds = array<i64: 1, 128>}, {pipeline_mode = #tpu.pipeline_mode<synchronous>, transform_indices = @transform_11, window_bounds = array<i64: 128, 128>}, {pipeline_mode = #tpu.pipeline_mode<synchronous>, transform_indices = @transform_12, window_bounds = array<i64: 1, 128>}, {transform_indices = @transform_13, window_bounds = array<i64: 1, 8, 128>}]} {
    %c0 = arith.constant 0 : index
    %c0_0 = arith.constant 0 : index
    %0 = vector.load %arg2[%c0, %c0_0] : memref<1x128xf32, #tpu.memory_space<vmem>>, vector<1x128xf32>
    %c0_1 = arith.constant 0 : index
    %c0_2 = arith.constant 0 : index
    %1 = vector.load %arg3[%c0_1, %c0_2] : memref<1x128xf32, #tpu.memory_space<vmem>>, vector<1x128xf32>
    %c0_3 = arith.constant 0 : index
    %c0_4 = arith.constant 0 : index
    %2 = vector.load %arg4[%c0_3, %c0_4] : memref<128x8xbf16, #tpu.memory_space<vmem>>, vector<128x8xbf16>
    %c0_5 = arith.constant 0 : index
    %c0_6 = arith.constant 0 : index
    %3 = vector.load %arg5[%c0_5, %c0_6] : memref<128x1xf32, #tpu.memory_space<vmem>>, vector<128x1xf32>
    %c0_7 = arith.constant 0 : index
    %c0_8 = arith.constant 0 : index
    %4 = vector.load %arg6[%c0_7, %c0_8] : memref<8x128xbf16, #tpu.memory_space<vmem>>, vector<8x128xbf16>
    %c0_9 = arith.constant 0 : index
    %c0_10 = arith.constant 0 : index
    %5 = vector.load %arg7[%c0_9, %c0_10] : memref<8x1xf32, #tpu.memory_space<vmem>>, vector<8x1xf32>
    %6 = tpu.iota {dimensions = array<i32: 1>} : vector<1x128xi32>
    %c32_i32 = arith.constant 32 : i32
    %7 = vector.broadcast %c32_i32 : i32 to vector<1x128xi32>
    %8 = arith.cmpi slt, %6, %7 : vector<1x128xi32>
    %9 = arith.extui %8 : vector<1x128xi1> to vector<1x128xi32>
    %10 = arith.sitofp %9 : vector<1x128xi32> to vector<1x128xf32>
    %cst = arith.constant 3.125000e-02 : f32
    %c0_i32 = arith.constant 0 : i32
    %11 = arith.index_cast %c0_i32 : i32 to index
    %c0_11 = arith.constant 0 : index
    %c0_12 = arith.constant 0 : index
    %12 = vector.load %arg1[%11, %c0_11, %c0_12] : memref<1x8x128xf32, #tpu.memory_space<vmem>>, vector<1x8x128xf32>
    %13 = vector.shape_cast %12 : vector<1x8x128xf32> to vector<8x128xf32>
    %cst_13 = arith.constant dense<0.000000e+00> : vector<8xf32>
    %14 = vector.multi_reduction <add>, %13, %cst_13 [1] : vector<8x128xf32> to vector<8xf32>
    %15 = vector.shape_cast %14 : vector<8xf32> to vector<8x1xf32>
    %16 = vector.broadcast %cst : f32 to vector<8x1xf32>
    %17 = arith.mulf %15, %16 : vector<8x1xf32>
    %18 = vector.broadcast %17 : vector<8x1xf32> to vector<8x128xf32>
    %19 = arith.subf %13, %18 : vector<8x128xf32>
    %20 = arith.mulf %19, %19 : vector<8x128xf32>
    %cst_14 = arith.constant dense<0.000000e+00> : vector<8xf32>
    %21 = vector.multi_reduction <add>, %20, %cst_14 [1] : vector<8x128xf32> to vector<8xf32>
    %22 = vector.shape_cast %21 : vector<8xf32> to vector<8x1xf32>
    %23 = arith.mulf %17, %17 : vector<8x1xf32>
    %cst_15 = arith.constant 9.600000e+01 : f32
    %24 = vector.broadcast %cst_15 : f32 to vector<8x1xf32>
    %25 = arith.mulf %24, %23 : vector<8x1xf32>
    %26 = arith.subf %22, %25 : vector<8x1xf32>
    %27 = vector.broadcast %cst : f32 to vector<8x1xf32>
    %28 = arith.mulf %26, %27 : vector<8x1xf32>
    %cst_16 = arith.constant 9.99999974E-6 : f32
    %29 = vector.broadcast %cst_16 : f32 to vector<8x1xf32>
    %30 = arith.addf %28, %29 : vector<8x1xf32>
    %31 = math.rsqrt %30 : vector<8x1xf32>
    %32 = vector.broadcast %31 : vector<8x1xf32> to vector<8x128xf32>
    %33 = vector.broadcast %0 : vector<1x128xf32> to vector<8x128xf32>
    %34 = arith.mulf %32, %33 : vector<8x128xf32>
    %35 = arith.mulf %19, %34 : vector<8x128xf32>
    %36 = vector.broadcast %1 : vector<1x128xf32> to vector<8x128xf32>
    %37 = arith.addf %35, %36 : vector<8x128xf32>
    %38 = arith.truncf %37 : vector<8x128xf32> to vector<8x128xbf16>
    %cst_17 = arith.constant dense<0.000000e+00> : vector<128x128xf32>
    %39 = tpu.matmul %2, %38, %cst_17 {dimension_numbers = #tpu.dot_dimension_numbers<[1], [0], [0], [1], [0, 0, 1, 1], [], []>} : vector<128x8xbf16>, vector<8x128xbf16>, vector<128x128xf32> -> vector<128x128xf32>
    %40 = vector.broadcast %3 : vector<128x1xf32> to vector<128x128xf32>
    %41 = arith.addf %39, %40 : vector<128x128xf32>
    %cst_18 = arith.constant 5.000000e-01 : f32
    %42 = vector.broadcast %cst_18 : f32 to vector<128x128xf32>
    %43 = arith.mulf %42, %41 : vector<128x128xf32>
    %cst_19 = arith.constant 0.707106769 : f32
    %44 = vector.broadcast %cst_19 : f32 to vector<128x128xf32>
    %45 = arith.mulf %41, %44 : vector<128x128xf32>
    %46 = math.erf %45 : vector<128x128xf32>
    %cst_20 = arith.constant 1.000000e+00 : f32
    %47 = vector.broadcast %cst_20 : f32 to vector<128x128xf32>
    %48 = arith.addf %47, %46 : vector<128x128xf32>
    %49 = arith.mulf %43, %48 : vector<128x128xf32>
    %50 = arith.truncf %49 : vector<128x128xf32> to vector<128x128xbf16>
    %cst_21 = arith.constant dense<0.000000e+00> : vector<8x128xf32>
    %51 = tpu.matmul %4, %50, %cst_21 {dimension_numbers = #tpu.dot_dimension_numbers<[1], [0], [0], [1], [0, 0, 1, 1], [], []>} : vector<8x128xbf16>, vector<128x128xbf16>, vector<8x128xf32> -> vector<8x128xf32>
    %52 = vector.broadcast %5 : vector<8x1xf32> to vector<8x128xf32>
    %53 = arith.addf %51, %52 : vector<8x128xf32>
    %54 = vector.broadcast %10 : vector<1x128xf32> to vector<8x128xf32>
    %55 = arith.mulf %53, %54 : vector<8x128xf32>
    %56 = arith.addf %13, %55 : vector<8x128xf32>
    %57 = arith.index_cast %c0_i32 : i32 to index
    %c0_22 = arith.constant 0 : index
    %c0_23 = arith.constant 0 : index
    %58 = vector.load %arg15[%57, %c0_22, %c0_23] : memref<1x8x128xf32, #tpu.memory_space<vmem>>, vector<1x8x128xf32>
    %59 = vector.shape_cast %58 : vector<1x8x128xf32> to vector<8x128xf32>
    %60 = vector.shape_cast %56 : vector<8x128xf32> to vector<1x8x128xf32>
    tpu.vector_store %arg15[%57, %c0_22, %c0_23], %60 {strides = array<i32>} : memref<1x8x128xf32, #tpu.memory_space<vmem>>, vector<1x8x128xf32>,
    %c1_i32 = arith.constant 1 : i32
    %c0_24 = arith.constant 0 : index
    %c0_25 = arith.constant 0 : index
    %c0_26 = arith.constant 0 : index
    %61 = vector.load %arg15[%c0_24, %c0_25, %c0_26] : memref<1x8x128xf32, #tpu.memory_space<vmem>>, vector<1x8x128xf32>
    %62 = vector.shape_cast %61 : vector<1x8x128xf32> to vector<8x128xf32>
    %c0_27 = arith.constant 0 : index
    %c0_28 = arith.constant 0 : index
    %63 = vector.load %arg8[%c0_27, %c0_28] : memref<1x128xf32, #tpu.memory_space<vmem>>, vector<1x128xf32>
    %c0_29 = arith.constant 0 : index
    %c0_30 = arith.constant 0 : index
    %64 = vector.load %arg9[%c0_29, %c0_30] : memref<1x128xf32, #tpu.memory_space<vmem>>, vector<1x128xf32>
    %cst_31 = arith.constant dense<0.000000e+00> : vector<8xf32>
    %65 = vector.multi_reduction <add>, %62, %cst_31 [1] : vector<8x128xf32> to vector<8xf32>
    %66 = vector.shape_cast %65 : vector<8xf32> to vector<8x1xf32>
    %cst_32 = arith.constant 3.125000e-02 : f32
    %67 = vector.broadcast %cst_32 : f32 to vector<8x1xf32>
    %68 = arith.mulf %66, %67 : vector<8x1xf32>
    %69 = vector.broadcast %68 : vector<8x1xf32> to vector<8x128xf32>
    %70 = arith.subf %62, %69 : vector<8x128xf32>
    %71 = arith.mulf %70, %70 : vector<8x128xf32>
    %cst_33 = arith.constant dense<0.000000e+00> : vector<8xf32>
    %72 = vector.multi_reduction <add>, %71, %cst_33 [1] : vector<8x128xf32> to vector<8xf32>
    %73 = vector.shape_cast %72 : vector<8xf32> to vector<8x1xf32>
    %74 = arith.mulf %68, %68 : vector<8x1xf32>
    %cst_34 = arith.constant 9.600000e+01 : f32
    %75 = vector.broadcast %cst_34 : f32 to vector<8x1xf32>
    %76 = arith.mulf %75, %74 : vector<8x1xf32>
    %77 = arith.subf %73, %76 : vector<8x1xf32>
    %cst_35 = arith.constant 3.125000e-02 : f32
    %78 = vector.broadcast %cst_35 : f32 to vector<8x1xf32>
    %79 = arith.mulf %77, %78 : vector<8x1xf32>
    %cst_36 = arith.constant 9.99999974E-6 : f32
    %80 = vector.broadcast %cst_36 : f32 to vector<8x1xf32>
    %81 = arith.addf %79, %80 : vector<8x1xf32>
    %82 = math.rsqrt %81 : vector<8x1xf32>
    %83 = vector.broadcast %82 : vector<8x1xf32> to vector<8x128xf32>
    %84 = vector.broadcast %63 : vector<1x128xf32> to vector<8x128xf32>
    %85 = arith.mulf %83, %84 : vector<8x128xf32>
    %86 = arith.mulf %70, %85 : vector<8x128xf32>
    %87 = vector.broadcast %64 : vector<1x128xf32> to vector<8x128xf32>
    %88 = arith.addf %86, %87 : vector<8x128xf32>
    %89 = arith.truncf %88 : vector<8x128xf32> to vector<8x128xbf16>
    %c0_37 = arith.constant 0 : index
    %c0_38 = arith.constant 0 : index
    %90 = vector.load %arg10[%c0_37, %c0_38] : memref<128x128xbf16, #tpu.memory_space<vmem>>, vector<128x128xbf16>
    %cst_39 = arith.constant dense<0.000000e+00> : vector<8x128xf32>
    %91 = tpu.matmul %89, %90, %cst_39 {dimension_numbers = #tpu.dot_dimension_numbers<[1], [0], [0], [1], [0, 0, 1, 1], [], []>} : vector<8x128xbf16>, vector<128x128xbf16>, vector<8x128xf32> -> vector<8x128xf32>
    %c0_40 = arith.constant 0 : index
    %c0_41 = arith.constant 0 : index
    %92 = vector.load %arg11[%c0_40, %c0_41] : memref<1x128xf32, #tpu.memory_space<vmem>>, vector<1x128xf32>
    %93 = vector.broadcast %92 : vector<1x128xf32> to vector<8x128xf32>
    %94 = arith.addf %91, %93 : vector<8x128xf32>
    %cst_42 = arith.constant 5.000000e-01 : f32
    %95 = vector.broadcast %cst_42 : f32 to vector<8x128xf32>
    %96 = arith.mulf %95, %94 : vector<8x128xf32>
    %cst_43 = arith.constant 0.707106769 : f32
    %97 = vector.broadcast %cst_43 : f32 to vector<8x128xf32>
    %98 = arith.mulf %94, %97 : vector<8x128xf32>
    %99 = math.erf %98 : vector<8x128xf32>
    %cst_44 = arith.constant 1.000000e+00 : f32
    %100 = vector.broadcast %cst_44 : f32 to vector<8x128xf32>
    %101 = arith.addf %100, %99 : vector<8x128xf32>
    %102 = arith.mulf %96, %101 : vector<8x128xf32>
    %103 = arith.truncf %102 : vector<8x128xf32> to vector<8x128xbf16>
    %c0_45 = arith.constant 0 : index
    %c0_46 = arith.constant 0 : index
    %104 = vector.load %arg12[%c0_45, %c0_46] : memref<128x128xbf16, #tpu.memory_space<vmem>>, vector<128x128xbf16>
    %cst_47 = arith.constant dense<0.000000e+00> : vector<8x128xf32>
    %105 = tpu.matmul %103, %104, %cst_47 {dimension_numbers = #tpu.dot_dimension_numbers<[1], [0], [0], [1], [0, 0, 1, 1], [], []>} : vector<8x128xbf16>, vector<128x128xbf16>, vector<8x128xf32> -> vector<8x128xf32>
    %c0_48 = arith.constant 0 : index
    %c0_49 = arith.constant 0 : index
    %106 = vector.load %arg13[%c0_48, %c0_49] : memref<1x128xf32, #tpu.memory_space<vmem>>, vector<1x128xf32>
    %107 = vector.broadcast %106 : vector<1x128xf32> to vector<8x128xf32>
    %108 = arith.addf %105, %107 : vector<8x128xf32>
    %109 = arith.addf %62, %108 : vector<8x128xf32>
    %110 = vector.shape_cast %109 : vector<8x128xf32> to vector<1x8x128xf32>
    %c0_50 = arith.constant 0 : index
    %c0_51 = arith.constant 0 : index
    %c0_52 = arith.constant 0 : index
    %111 = vector.load %arg14[%c0_50, %c0_51, %c0_52] : memref<1x8x128xf32, #tpu.memory_space<vmem>>, vector<1x8x128xf32>
    tpu.vector_store %arg14[%c0_50, %c0_51, %c0_52], %110 {strides = array<i32>} : memref<1x8x128xf32, #tpu.memory_space<vmem>>, vector<1x8x128xf32>,
    return
  }
  func.func @transform_0(%arg0: i32) -> (i32, i32, i32) {
    %c0_i32 = arith.constant 0 : i32
    %c0_i32_0 = arith.constant 0 : i32
    %c0_i32_1 = arith.constant 0 : i32
    return %arg0, %c0_i32, %c0_i32_0 : i32, i32, i32
  }
  func.func @transform_1(%arg0: i32) -> (i32, i32) {
    %c0_i32 = arith.constant 0 : i32
    %c0_i32_0 = arith.constant 0 : i32
    %c0_i32_1 = arith.constant 0 : i32
    return %c0_i32, %c0_i32_0 : i32, i32
  }
  func.func @transform_2(%arg0: i32) -> (i32, i32) {
    %c0_i32 = arith.constant 0 : i32
    %c0_i32_0 = arith.constant 0 : i32
    %c0_i32_1 = arith.constant 0 : i32
    return %c0_i32, %c0_i32_0 : i32, i32
  }
  func.func @transform_3(%arg0: i32) -> (i32, i32) {
    %c0_i32 = arith.constant 0 : i32
    %c0_i32_0 = arith.constant 0 : i32
    %c0_i32_1 = arith.constant 0 : i32
    return %c0_i32, %c0_i32_0 : i32, i32
  }
  func.func @transform_4(%arg0: i32) -> (i32, i32) {
    %c0_i32 = arith.constant 0 : i32
    %c0_i32_0 = arith.constant 0 : i32
    %c0_i32_1 = arith.constant 0 : i32
    return %c0_i32, %c0_i32_0 : i32, i32
  }
  func.func @transform_5(%arg0: i32) -> (i32, i32) {
    %c0_i32 = arith.constant 0 : i32
    %c0_i32_0 = arith.constant 0 : i32
    %c0_i32_1 = arith.constant 0 : i32
    return %c0_i32, %c0_i32_0 : i32, i32
  }
  func.func @transform_6(%arg0: i32) -> (i32, i32) {
    %c0_i32 = arith.constant 0 : i32
    %c0_i32_0 = arith.constant 0 : i32
    %c0_i32_1 = arith.constant 0 : i32
    return %c0_i32, %c0_i32_0 : i32, i32
  }
  func.func @transform_7(%arg0: i32) -> (i32, i32) {
    %c0_i32 = arith.constant 0 : i32
    %c0_i32_0 = arith.constant 0 : i32
    %c0_i32_1 = arith.constant 0 : i32
    return %c0_i32, %c0_i32_0 : i32, i32
  }
  func.func @transform_8(%arg0: i32) -> (i32, i32) {
    %c0_i32 = arith.constant 0 : i32
    %c0_i32_0 = arith.constant 0 : i32
    %c0_i32_1 = arith.constant 0 : i32
    return %c0_i32, %c0_i32_0 : i32, i32
  }
  func.func @transform_9(%arg0: i32) -> (i32, i32) {
    %c0_i32 = arith.constant 0 : i32
    %c0_i32_0 = arith.constant 0 : i32
    %c0_i32_1 = arith.constant 0 : i32
    return %c0_i32, %c0_i32_0 : i32, i32
  }
  func.func @transform_10(%arg0: i32) -> (i32, i32) {
    %c0_i32 = arith.constant 0 : i32
    %c0_i32_0 = arith.constant 0 : i32
    %c0_i32_1 = arith.constant 0 : i32
    return %c0_i32, %c0_i32_0 : i32, i32
  }
  func.func @transform_11(%arg0: i32) -> (i32, i32) {
    %c0_i32 = arith.constant 0 : i32
    %c0_i32_0 = arith.constant 0 : i32
    %c0_i32_1 = arith.constant 0 : i32
    return %c0_i32, %c0_i32_0 : i32, i32
  }
  func.func @transform_12(%arg0: i32) -> (i32, i32) {
    %c0_i32 = arith.constant 0 : i32
    %c0_i32_0 = arith.constant 0 : i32
    %c0_i32_1 = arith.constant 0 : i32
    return %c0_i32, %c0_i32_0 : i32, i32
  }
  func.func @transform_13(%arg0: i32) -> (i32, i32, i32) {
    %c0_i32 = arith.constant 0 : i32
    %c0_i32_0 = arith.constant 0 : i32
    %c0_i32_1 = arith.constant 0 : i32
    return %arg0, %c0_i32, %c0_i32_0 : i32, i32, i32
  }
}

</mosaic_0001>

<llo_original>
// kernel: tpu_custom_call.1
$region0: #{tpu_custom_call.1}
  #allocation0 [shape = 'u32[]', space=smem, size = 0x4, offset = 0x4, fixed_abs, tag = 'smem constant byte address 0x4 - core index']
  #allocation1 [shape = 'u32[144,128]{1,0:T(1,128)}', space=vmem, size = 0x12000, scoped, tag = 'internal scratch']
  #allocation2 [shape = 'f32[1,8,128]{2,1,0:T(8,128)}', space=vmem, size = 0x1000, scoped, tag = 'scratch operand']
  %s0 = inlined_call_operand.vmem [shape: f32[2,8,128], index: 0, kind: input, shape index: {}]
  %s1 = inlined_call_operand.vmem [shape: f32[1,128], index: 1, kind: input, shape index: {}]
  %s2 = inlined_call_operand.vmem [shape: f32[1,128], index: 2, kind: input, shape index: {}]
  %s3 = inlined_call_operand.vmem [shape: bf16[128,8], index: 3, kind: input, shape index: {}]
  %s4 = inlined_call_operand.vmem [shape: f32[128,1], index: 4, kind: input, shape index: {}]
  %s5 = inlined_call_operand.vmem [shape: bf16[8,128], index: 5, kind: input, shape index: {}]
  %s6 = inlined_call_operand.vmem [shape: f32[8,1], index: 6, kind: input, shape index: {}]
  %s7 = inlined_call_operand.vmem [shape: f32[1,128], index: 7, kind: input, shape index: {}]
  %s8 = inlined_call_operand.vmem [shape: f32[1,128], index: 8, kind: input, shape index: {}]
  %s9 = inlined_call_operand.vmem [shape: bf16[128,128], index: 9, kind: input, shape index: {}]
  %s10 = inlined_call_operand.vmem [shape: f32[1,128], index: 10, kind: input, shape index: {}]
  %s11 = inlined_call_operand.vmem [shape: bf16[128,128], index: 11, kind: input, shape index: {}]
  %s12 = inlined_call_operand.vmem [shape: f32[1,128], index: 12, kind: input, shape index: {}]
  %s13 = inlined_call_operand.hbm [shape: f32[2,8,128], index: 13, kind: output, shape index: {}]
  %s14 = sld [smem:[#allocation0]]
  $region85: #{tpu_custom_call.1} parent=0
    _
  %s16 = ssub.s32 1, %s14
  %s17 = scalar_select 0, %s16, %s14
  $region1: #{tpu_custom_call.1} parent=0
    #allocation3 [shape = 'u8[8192]{0}', space=vmem, size = 0x2000, scoped, tag = 'output window, operand 0']
    #allocation4 [shape = 's32[2]{0}', space=sflag, size = 0x8, scoped, tag = 'scoped memory for tpu_custom_call.1']
    %18 = vsyncpa [#allocation4], 0
    %s19 = scalar_lea.sflag [#allocation4], 1
    %20 = vsyncpa %s19, 0
    loop: start=0, step=1, limit=4
    $region2: #{tpu_custom_call.1} parent=1 // loop_pre_header
      _
    $region3: #{tpu_custom_call.1} parent=1 // loop_header
      %s22 = sphi 0, %s26
      %p23 = scmp.ge.s32.totalorder %s22, 4
      %s32 = sphi 0, %s34
      %s35 = sphi 0, %s32
      %s36 = sphi 0, %s35
      %s52 = sphi 0, %s36
      %s56 = sphi 0, %s56
      %s58 = sphi 0, %s56
      %s59 = sphi 0, %s58
      %s73 = sphi 0, %s59
      %s77 = sphi 0, %s77
      %s79 = sphi 0, %s77
      %s80 = sphi 0, %s79
      %s94 = sphi 0, %s80
      %s98 = sphi 0, %s98
      %s100 = sphi 0, %s98
      %s101 = sphi 0, %s100
      %s115 = sphi 0, %s101
      %s119 = sphi 0, %s119
      %s121 = sphi 0, %s119
      %s122 = sphi 0, %s121
      %s136 = sphi 0, %s122
      %s140 = sphi 0, %s140
      %s142 = sphi 0, %s140
      %s143 = sphi 0, %s142
      %s157 = sphi 0, %s143
      %s161 = sphi 0, %s161
      %s163 = sphi 0, %s161
      %s164 = sphi 0, %s163
      %s178 = sphi 0, %s164
      %s182 = sphi 0, %s182
      %s184 = sphi 0, %s182
      %s185 = sphi 0, %s184
      %s199 = sphi 0, %s185
      %s203 = sphi 0, %s203
      %s205 = sphi 0, %s203
      %s206 = sphi 0, %s205
      %s220 = sphi 0, %s206
      %s224 = sphi 0, %s224
      %s226 = sphi 0, %s224
      %s227 = sphi 0, %s226
      %s241 = sphi 0, %s227
      %s245 = sphi 0, %s245
      %s247 = sphi 0, %s245
      %s248 = sphi 0, %s247
      %s262 = sphi 0, %s248
      %s266 = sphi 0, %s266
      %s268 = sphi 0, %s266
      %s269 = sphi 0, %s268
      %s283 = sphi 0, %s269
      %s287 = sphi 0, %s287
      %s289 = sphi 0, %s287
      %s290 = sphi 0, %s289
      %s304 = sphi 0, %s290
      %s310 = sphi 0, %s312
      %s313 = sphi 0, %s310
      %s314 = sphi 0, %s313
      %s330 = sphi 0, %s314
    $region4: #{tpu_custom_call.1} parent=1 // loop_header_branch
      %25 = sbr.rel (%p23) target = $region8
    $region5: #{tpu_custom_call.1} parent=1 // loop_body
      %s27 = ssub.s32 %s22, 1
      %s28 = ssub.s32 %s22, 2
      %s29 = sadd.s32 %s22, 1
      %s30 = ssub.s32 %s22, %s29
      %p31 = scmp.eq.s32.totalorder %s30, 0
      %s33 = sadd.s32 %s32, 1
      %s34 = scalar_select %p31, %s32, %s33
      %p37 = pneg %p31
      %p38 = scmp.eq.s32.totalorder %s22, 1
      %p39 = por %p37, %p38
      %p40 = scmp.ne.s32.totalorder %s32, %s35
      %p41 = scmp.eq.s32.totalorder %s22, 0
      %p42 = por %p40, %p41
      %p43 = scmp.ne.s32.totalorder %s32, %s35
      %p44 = scmp.eq.s32.totalorder %s27, 1
      %p45 = por %p43, %p44
      %p46 = scmp.ne.s32.totalorder %s35, %s36
      %p47 = scmp.eq.s32.totalorder %s27, 0
      %p48 = por %p46, %p47
      %p49 = scmp.ne.s32.totalorder %s35, %s36
      %p50 = scmp.eq.s32.totalorder %s28, 1
      %p51 = por %p49, %p50
      %p53 = scmp.ne.s32.totalorder %s36, %s52
      %p54 = scmp.eq.s32.totalorder %s28, 0
      %p55 = por %p53, %p54
      %s57 = sadd.s32 %s56, 1
      %p60 = scmp.eq.s32.totalorder %s22, 1
      %p61 = scmp.ne.s32.totalorder %s56, %s58
      %p62 = scmp.eq.s32.totalorder %s22, 0
      %p63 = por %p61, %p62
      %p64 = scmp.ne.s32.totalorder %s56, %s58
      %p65 = scmp.eq.s32.totalorder %s27, 1
      %p66 = por %p64, %p65
      %p67 = scmp.ne.s32.totalorder %s58, %s59
      %p68 = scmp.eq.s32.totalorder %s27, 0
      %p69 = por %p67, %p68
      %p70 = scmp.ne.s32.totalorder %s58, %s59
      %p71 = scmp.eq.s32.totalorder %s28, 1
      %p72 = por %p70, %p71
      %p74 = scmp.ne.s32.totalorder %s59, %s73
      %p75 = scmp.eq.s32.totalorder %s28, 0
      %p76 = por %p74, %p75
      %s78 = sadd.s32 %s77, 1
      %p81 = scmp.eq.s32.totalorder %s22, 1
      %p82 = scmp.ne.s32.totalorder %s77, %s79
      %p83 = scmp.eq.s32.totalorder %s22, 0
      %p84 = por %p82, %p83
      %p85 = scmp.ne.s32.totalorder %s77, %s79
      %p86 = scmp.eq.s32.totalorder %s27, 1
      %p87 = por %p85, %p86
      %p88 = scmp.ne.s32.totalorder %s79, %s80
      %p89 = scmp.eq.s32.totalorder %s27, 0
      %p90 = por %p88, %p89
      %p91 = scmp.ne.s32.totalorder %s79, %s80
      %p92 = scmp.eq.s32.totalorder %s28, 1
      %p93 = por %p91, %p92
      %p95 = scmp.ne.s32.totalorder %s80, %s94
      %p96 = scmp.eq.s32.totalorder %s28, 0
      %p97 = por %p95, %p96
      %s99 = sadd.s32 %s98, 1
      %p102 = scmp.eq.s32.totalorder %s22, 1
      %p103 = scmp.ne.s32.totalorder %s98, %s100
      %p104 = scmp.eq.s32.totalorder %s22, 0
      %p105 = por %p103, %p104
      %p106 = scmp.ne.s32.totalorder %s98, %s100
      %p107 = scmp.eq.s32.totalorder %s27, 1
      %p108 = por %p106, %p107
      %p109 = scmp.ne.s32.totalorder %s100, %s101
      %p110 = scmp.eq.s32.totalorder %s27, 0
      %p111 = por %p109, %p110
      %p112 = scmp.ne.s32.totalorder %s100, %s101
      %p113 = scmp.eq.s32.totalorder %s28, 1
      %p114 = por %p112, %p113
      %p116 = scmp.ne.s32.totalorder %s101, %s115
      %p117 = scmp.eq.s32.totalorder %s28, 0
      %p118 = por %p116, %p117
      %s120 = sadd.s32 %s119, 1
      %p123 = scmp.eq.s32.totalorder %s22, 1
      %p124 = scmp.ne.s32.totalorder %s119, %s121
      %p125 = scmp.eq.s32.totalorder %s22, 0
      %p126 = por %p124, %p125
      %p127 = scmp.ne.s32.totalorder %s119, %s121
      %p128 = scmp.eq.s32.totalorder %s27, 1
      %p129 = por %p127, %p128
      %p130 = scmp.ne.s32.totalorder %s121, %s122
      %p131 = scmp.eq.s32.totalorder %s27, 0
      %p132 = por %p130, %p131
      %p133 = scmp.ne.s32.totalorder %s121, %s122
      %p134 = scmp.eq.s32.totalorder %s28, 1
      %p135 = por %p133, %p134
      %p137 = scmp.ne.s32.totalorder %s122, %s136
      %p138 = scmp.eq.s32.totalorder %s28, 0
      %p139 = por %p137, %p138
      %s141 = sadd.s32 %s140, 1
      %p144 = scmp.eq.s32.totalorder %s22, 1
      %p145 = scmp.ne.s32.totalorder %s140, %s142
      %p146 = scmp.eq.s32.totalorder %s22, 0
      %p147 = por %p145, %p146
      %p148 = scmp.ne.s32.totalorder %s140, %s142
      %p149 = scmp.eq.s32.totalorder %s27, 1
      %p150 = por %p148, %p149
      %p151 = scmp.ne.s32.totalorder %s142, %s143
      %p152 = scmp.eq.s32.totalorder %s27, 0
      %p153 = por %p151, %p152
      %p154 = scmp.ne.s32.totalorder %s142, %s143
      %p155 = scmp.eq.s32.totalorder %s28, 1
      %p156 = por %p154, %p155
      %p158 = scmp.ne.s32.totalorder %s143, %s157
      %p159 = scmp.eq.s32.totalorder %s28, 0
      %p160 = por %p158, %p159
      %s162 = sadd.s32 %s161, 1
      %p165 = scmp.eq.s32.totalorder %s22, 1
      %p166 = scmp.ne.s32.totalorder %s161, %s163
      %p167 = scmp.eq.s32.totalorder %s22, 0
      %p168 = por %p166, %p167
      %p169 = scmp.ne.s32.totalorder %s161, %s163
      %p170 = scmp.eq.s32.totalorder %s27, 1
      %p171 = por %p169, %p170
      %p172 = scmp.ne.s32.totalorder %s163, %s164
      %p173 = scmp.eq.s32.totalorder %s27, 0
      %p174 = por %p172, %p173
      %p175 = scmp.ne.s32.totalorder %s163, %s164
      %p176 = scmp.eq.s32.totalorder %s28, 1
      %p177 = por %p175, %p176
      %p179 = scmp.ne.s32.totalorder %s164, %s178
      %p180 = scmp.eq.s32.totalorder %s28, 0
      %p181 = por %p179, %p180
      %s183 = sadd.s32 %s182, 1
      %p186 = scmp.eq.s32.totalorder %s22, 1
      %p187 = scmp.ne.s32.totalorder %s182, %s184
      %p188 = scmp.eq.s32.totalorder %s22, 0
      %p189 = por %p187, %p188
      %p190 = scmp.ne.s32.totalorder %s182, %s184
      %p191 = scmp.eq.s32.totalorder %s27, 1
      %p192 = por %p190, %p191
      %p193 = scmp.ne.s32.totalorder %s184, %s185
      %p194 = scmp.eq.s32.totalorder %s27, 0
      %p195 = por %p193, %p194
      %p196 = scmp.ne.s32.totalorder %s184, %s185
      %p197 = scmp.eq.s32.totalorder %s28, 1
      %p198 = por %p196, %p197
      %p200 = scmp.ne.s32.totalorder %s185, %s199
      %p201 = scmp.eq.s32.totalorder %s28, 0
      %p202 = por %p200, %p201
      %s204 = sadd.s32 %s203, 1
      %p207 = scmp.eq.s32.totalorder %s22, 1
      %p208 = scmp.ne.s32.totalorder %s203, %s205
      %p209 = scmp.eq.s32.totalorder %s22, 0
      %p210 = por %p208, %p209
      %p211 = scmp.ne.s32.totalorder %s203, %s205
      %p212 = scmp.eq.s32.totalorder %s27, 1
      %p213 = por %p211, %p212
      %p214 = scmp.ne.s32.totalorder %s205, %s206
      %p215 = scmp.eq.s32.totalorder %s27, 0
      %p216 = por %p214, %p215
      %p217 = scmp.ne.s32.totalorder %s205, %s206
      %p218 = scmp.eq.s32.totalorder %s28, 1
      %p219 = por %p217, %p218
      %p221 = scmp.ne.s32.totalorder %s206, %s220
      %p222 = scmp.eq.s32.totalorder %s28, 0
      %p223 = por %p221, %p222
      %s225 = sadd.s32 %s224, 1
      %p228 = scmp.eq.s32.totalorder %s22, 1
      %p229 = scmp.ne.s32.totalorder %s224, %s226
      %p230 = scmp.eq.s32.totalorder %s22, 0
      %p231 = por %p229, %p230
      %p232 = scmp.ne.s32.totalorder %s224, %s226
      %p233 = scmp.eq.s32.totalorder %s27, 1
      %p234 = por %p232, %p233
      %p235 = scmp.ne.s32.totalorder %s226, %s227
      %p236 = scmp.eq.s32.totalorder %s27, 0
      %p237 = por %p235, %p236
      %p238 = scmp.ne.s32.totalorder %s226, %s227
      %p239 = scmp.eq.s32.totalorder %s28, 1
      %p240 = por %p238, %p239
      %p242 = scmp.ne.s32.totalorder %s227, %s241
      %p243 = scmp.eq.s32.totalorder %s28, 0
      %p244 = por %p242, %p243
      %s246 = sadd.s32 %s245, 1
      %p249 = scmp.eq.s32.totalorder %s22, 1
      %p250 = scmp.ne.s32.totalorder %s245, %s247
      %p251 = scmp.eq.s32.totalorder %s22, 0
      %p252 = por %p250, %p251
      %p253 = scmp.ne.s32.totalorder %s245, %s247
      %p254 = scmp.eq.s32.totalorder %s27, 1
      %p255 = por %p253, %p254
      %p256 = scmp.ne.s32.totalorder %s247, %s248
      %p257 = scmp.eq.s32.totalorder %s27, 0
      %p258 = por %p256, %p257
      %p259 = scmp.ne.s32.totalorder %s247, %s248
      %p260 = scmp.eq.s32.totalorder %s28, 1
      %p261 = por %p259, %p260
      %p263 = scmp.ne.s32.totalorder %s248, %s262
      %p264 = scmp.eq.s32.totalorder %s28, 0
      %p265 = por %p263, %p264
      %s267 = sadd.s32 %s266, 1
      %p270 = scmp.eq.s32.totalorder %s22, 1
      %p271 = scmp.ne.s32.totalorder %s266, %s268
      %p272 = scmp.eq.s32.totalorder %s22, 0
      %p273 = por %p271, %p272
      %p274 = scmp.ne.s32.totalorder %s266, %s268
      %p275 = scmp.eq.s32.totalorder %s27, 1
      %p276 = por %p274, %p275
      %p277 = scmp.ne.s32.totalorder %s268, %s269
      %p278 = scmp.eq.s32.totalorder %s27, 0
      %p279 = por %p277, %p278
      %p280 = scmp.ne.s32.totalorder %s268, %s269
      %p281 = scmp.eq.s32.totalorder %s28, 1
      %p282 = por %p280, %p281
      %p284 = scmp.ne.s32.totalorder %s269, %s283
      %p285 = scmp.eq.s32.totalorder %s28, 0
      %p286 = por %p284, %p285
      %s288 = sadd.s32 %s287, 1
      %p291 = scmp.eq.s32.totalorder %s22, 1
      %p292 = scmp.ne.s32.totalorder %s287, %s289
      %p293 = scmp.eq.s32.totalorder %s22, 0
      %p294 = por %p292, %p293
      %p295 = scmp.ne.s32.totalorder %s287, %s289
      %p296 = scmp.eq.s32.totalorder %s27, 1
      %p297 = por %p295, %p296
      %p298 = scmp.ne.s32.totalorder %s289, %s290
      %p299 = scmp.eq.s32.totalorder %s27, 0
      %p300 = por %p298, %p299
      %p301 = scmp.ne.s32.totalorder %s289, %s290
      %p302 = scmp.eq.s32.totalorder %s28, 1
      %p303 = por %p301, %p302
      %p305 = scmp.ne.s32.totalorder %s290, %s304
      %p306 = scmp.eq.s32.totalorder %s28, 0
      %p307 = por %p305, %p306
      %s308 = ssub.s32 %s22, %s29
      %p309 = scmp.eq.s32.totalorder %s308, 0
      %s311 = sadd.s32 %s310, 1
      %s312 = scalar_select %p309, %s310, %s311
      %p315 = pneg %p309
      %p316 = scmp.eq.s32.totalorder %s22, 1
      %p317 = por %p315, %p316
      %p318 = scmp.ne.s32.totalorder %s310, %s313
      %p319 = scmp.eq.s32.totalorder %s22, 0
      %p320 = por %p318, %p319
      %p321 = scmp.ne.s32.totalorder %s310, %s313
      %p322 = scmp.eq.s32.totalorder %s27, 1
      %p323 = por %p321, %p322
      %p324 = scmp.ne.s32.totalorder %s313, %s314
      %p325 = scmp.eq.s32.totalorder %s27, 0
      %p326 = por %p324, %p325
      %p327 = scmp.ne.s32.totalorder %s313, %s314
      %p328 = scmp.eq.s32.totalorder %s28, 1
      %p329 = por %p327, %p328
      %p331 = scmp.ne.s32.totalorder %s314, %s330
      %p332 = scmp.eq.s32.totalorder %s28, 0
      %p333 = por %p331, %p332
      %p334 = scmp.le.s32.totalorder 1, %s22
      %p335 = scmp.lt.s32.totalorder %s22, 3
      %p336 = pnand %p334, %p335
      %p337 = pneg %p336
      // Predicated region
      $region9: #{tpu_custom_call.1} parent=5 // pred_check
        _
      $region10: #{tpu_custom_call.1} parent=5 // pred_check_branch
        %339 = sbr.rel (%p336) target = $region12
      $region11: #{tpu_custom_call.1} parent=5 // pred_region
        %s340 = ssub.s32 %s22, 1
        // Predicated region
        $region13: #{tpu_custom_call.1} parent=11 // pred_check
          %p341 = pneg %p69
        $region14: #{tpu_custom_call.1} parent=11 // pred_check_branch
          %343 = sbr.rel (%p341) target = $region16
        $region15: #{tpu_custom_call.1} parent=11 // pred_region
          _
        $region16: #{tpu_custom_call.1} parent=11 // pred_fallthru
          _
        // Predicated region
        $region17: #{tpu_custom_call.1} parent=11 // pred_check
          %p344 = pneg %p90
        $region18: #{tpu_custom_call.1} parent=11 // pred_check_branch
          %346 = sbr.rel (%p344) target = $region20
        $region19: #{tpu_custom_call.1} parent=11 // pred_region
          _
        $region20: #{tpu_custom_call.1} parent=11 // pred_fallthru
          _
        // Predicated region
        $region21: #{tpu_custom_call.1} parent=11 // pred_check
          %p347 = pneg %p111
        $region22: #{tpu_custom_call.1} parent=11 // pred_check_branch
          %349 = sbr.rel (%p347) target = $region24
        $region23: #{tpu_custom_call.1} parent=11 // pred_region
          _
        $region24: #{tpu_custom_call.1} parent=11 // pred_fallthru
          _
        // Predicated region
        $region25: #{tpu_custom_call.1} parent=11 // pred_check
          %p350 = pneg %p132
        $region26: #{tpu_custom_call.1} parent=11 // pred_check_branch
          %352 = sbr.rel (%p350) target = $region28
        $region27: #{tpu_custom_call.1} parent=11 // pred_region
          _
        $region28: #{tpu_custom_call.1} parent=11 // pred_fallthru
          _
        // Predicated region
        $region29: #{tpu_custom_call.1} parent=11 // pred_check
          %p353 = pneg %p153
        $region30: #{tpu_custom_call.1} parent=11 // pred_check_branch
          %355 = sbr.rel (%p353) target = $region32
        $region31: #{tpu_custom_call.1} parent=11 // pred_region
          _
        $region32: #{tpu_custom_call.1} parent=11 // pred_fallthru
          _
        // Predicated region
        $region33: #{tpu_custom_call.1} parent=11 // pred_check
          %p356 = pneg %p174
        $region34: #{tpu_custom_call.1} parent=11 // pred_check_branch
          %358 = sbr.rel (%p356) target = $region36
        $region35: #{tpu_custom_call.1} parent=11 // pred_region
          _
        $region36: #{tpu_custom_call.1} parent=11 // pred_fallthru
          _
        // Predicated region
        $region37: #{tpu_custom_call.1} parent=11 // pred_check
          %p359 = pneg %p195
        $region38: #{tpu_custom_call.1} parent=11 // pred_check_branch
          %361 = sbr.rel (%p359) target = $region40
        $region39: #{tpu_custom_call.1} parent=11 // pred_region
          _
        $region40: #{tpu_custom_call.1} parent=11 // pred_fallthru
          _
        // Predicated region
        $region41: #{tpu_custom_call.1} parent=11 // pred_check
          %p362 = pneg %p216
        $region42: #{tpu_custom_call.1} parent=11 // pred_check_branch
          %364 = sbr.rel (%p362) target = $region44
        $region43: #{tpu_custom_call.1} parent=11 // pred_region
          _
        $region44: #{tpu_custom_call.1} parent=11 // pred_fallthru
          _
        // Predicated region
        $region45: #{tpu_custom_call.1} parent=11 // pred_check
          %p365 = pneg %p237
        $region46: #{tpu_custom_call.1} parent=11 // pred_check_branch
          %367 = sbr.rel (%p365) target = $region48
        $region47: #{tpu_custom_call.1} parent=11 // pred_region
          _
        $region48: #{tpu_custom_call.1} parent=11 // pred_fallthru
          _
        // Predicated region
        $region49: #{tpu_custom_call.1} parent=11 // pred_check
          %p368 = pneg %p258
        $region50: #{tpu_custom_call.1} parent=11 // pred_check_branch
          %370 = sbr.rel (%p368) target = $region52
        $region51: #{tpu_custom_call.1} parent=11 // pred_region
          _
        $region52: #{tpu_custom_call.1} parent=11 // pred_fallthru
          _
        // Predicated region
        $region53: #{tpu_custom_call.1} parent=11 // pred_check
          %p371 = pneg %p279
        $region54: #{tpu_custom_call.1} parent=11 // pred_check_branch
          %373 = sbr.rel (%p371) target = $region56
        $region55: #{tpu_custom_call.1} parent=11 // pred_region
          _
        $region56: #{tpu_custom_call.1} parent=11 // pred_fallthru
          _
        // Predicated region
        $region57: #{tpu_custom_call.1} parent=11 // pred_check
          %p374 = pneg %p300
        $region58: #{tpu_custom_call.1} parent=11 // pred_check_branch
          %376 = sbr.rel (%p374) target = $region60
        $region59: #{tpu_custom_call.1} parent=11 // pred_region
          _
        $region60: #{tpu_custom_call.1} parent=11 // pred_fallthru
          _
      $region12: #{tpu_custom_call.1} parent=5 // pred_fallthru
        _
      %p377 = scmp.lt.s32.totalorder %s22, 2
      // Predicated region
      $region61: #{tpu_custom_call.1} parent=5 // pred_check
        %p378 = pneg %p377
      $region62: #{tpu_custom_call.1} parent=5 // pred_check_branch
        %380 = sbr.rel (%p378) target = $region64
      $region63: #{tpu_custom_call.1} parent=5 // pred_region
        // Predicated region
        $region65: #{tpu_custom_call.1} parent=63 // pred_check
          %p381 = pneg %p42
        $region66: #{tpu_custom_call.1} parent=63 // pred_check_branch
          %383 = sbr.rel (%p381) target = $region68
        $region67: #{tpu_custom_call.1} parent=63 // pred_region
          %p384 = scmp.lt.s32.totalorder %s22, 1
          %s385 = scalar_select %p384, %s22, 1
          %s386 = smul.addr %s385, 8
          %s387 = scalar_lea.vmem %s0, %s386
        $region68: #{tpu_custom_call.1} parent=63 // pred_fallthru
          _
      $region64: #{tpu_custom_call.1} parent=5 // pred_fallthru
        _
      %p388 = scmp.le.s32.totalorder 1, %s22
      %p389 = scmp.lt.s32.totalorder %s22, 3
      %p390 = pnand %p388, %p389
      %p391 = pneg %p390
      // Predicated region
      $region69: #{tpu_custom_call.1} parent=5 // pred_check
        _
      $region70: #{tpu_custom_call.1} parent=5 // pred_check_branch
        %393 = sbr.rel (%p390) target = $region72
      $region71: #{tpu_custom_call.1} parent=5 // pred_region
        %s394 = ssub.s32 %s22, 1
        %p395 = scmp.lt.s32.totalorder %s27, 1
        %s396 = scalar_select %p395, %s27, 1
        %s397 = smul.addr %s396, 8
        %s398 = scalar_lea.vmem %s0, %s397
        %p399 = pneg %p48
        %p400 = pneg %p45
        %p401 = pneg %p69
        %p402 = pneg %p66
        %p403 = pneg %p90
        %p404 = pneg %p87
        %p405 = pneg %p111
        %p406 = pneg %p108
        %p407 = pneg %p132
        %p408 = pneg %p129
        %p409 = pneg %p153
        %p410 = pneg %p150
        %p411 = pneg %p174
        %p412 = pneg %p171
        %p413 = pneg %p195
        %p414 = pneg %p192
        %p415 = pneg %p216
        %p416 = pneg %p213
        %p417 = pneg %p237
        %p418 = pneg %p234
        %p419 = pneg %p258
        %p420 = pneg %p255
        %p421 = pneg %p279
        %p422 = pneg %p276
        %p423 = pneg %p300
        %p424 = pneg %p297
        %p425 = pneg %p326
        %p426 = pneg %p323
        %s427 = sand.u32 %s313, 1
        %s428 = scalar_lea.sflag [#allocation4], %s427
        %s429 = sand.u32 %s313, 1
        %s430 = smul.addr %s429, 8
        %s431 = scalar_lea.vmem [#allocation3], %s430
        %p432 = scmp.lt.s32.totalorder %s27, 1
        %s433 = scalar_select %p432, %s27, 1
        %s434 = smul.addr %s433, 8
        %s435 = scalar_lea.vmem %s0, %s434
        %v437 = vld [vmem:[%s1] sm:$0x1]
        %v438 = vld [vmem:[%s2] sm:$0x1]
        %v439 = vld [vmem:[%s3] sm:$0xf]
        %v440 = vld [vmem:[%s3 + $0x4] sm:$0xf]
        %v441 = vld [vmem:[%s3 + $0x8] sm:$0xf]
        %v442 = vld [vmem:[%s3 + $0xc] sm:$0xf]
        %v443 = vld [vmem:[%s3 + $0x10] sm:$0xf]
        %v444 = vld [vmem:[%s3 + $0x14] sm:$0xf]
        %v445 = vld [vmem:[%s3 + $0x18] sm:$0xf]
        %v446 = vld [vmem:[%s3 + $0x1c] sm:$0xf]
        %v447 = vld [vmem:[%s3 + $0x20] sm:$0xf]
        %v448 = vld [vmem:[%s3 + $0x24] sm:$0xf]
        %v449 = vld [vmem:[%s3 + $0x28] sm:$0xf]
        %v450 = vld [vmem:[%s3 + $0x2c] sm:$0xf]
        %v451 = vld [vmem:[%s3 + $0x30] sm:$0xf]
        %v452 = vld [vmem:[%s3 + $0x34] sm:$0xf]
        %v453 = vld [vmem:[%s3 + $0x38] sm:$0xf]
        %v454 = vld [vmem:[%s3 + $0x3c] sm:$0xf]
        %v455 = vld [vmem:[%s4] sm:$0xff]
        %v456 = vld [vmem:[%s4 + $0x8] sm:$0xff]
        %v457 = vld [vmem:[%s4 + $0x10] sm:$0xff]
        %v458 = vld [vmem:[%s4 + $0x18] sm:$0xff]
        %v459 = vld [vmem:[%s4 + $0x20] sm:$0xff]
        %v460 = vld [vmem:[%s4 + $0x28] sm:$0xff]
        %v461 = vld [vmem:[%s4 + $0x30] sm:$0xff]
        %v462 = vld [vmem:[%s4 + $0x38] sm:$0xff]
        %v463 = vld [vmem:[%s4 + $0x40] sm:$0xff]
        %v464 = vld [vmem:[%s4 + $0x48] sm:$0xff]
        %v465 = vld [vmem:[%s4 + $0x50] sm:$0xff]
        %v466 = vld [vmem:[%s4 + $0x58] sm:$0xff]
        %v467 = vld [vmem:[%s4 + $0x60] sm:$0xff]
        %v468 = vld [vmem:[%s4 + $0x68] sm:$0xff]
        %v469 = vld [vmem:[%s4 + $0x70] sm:$0xff]
        %v470 = vld [vmem:[%s4 + $0x78] sm:$0xff]
        %v471 = vld [vmem:[%s5] sm:$0xf]
        %v472 = vld [vmem:[%s6] sm:$0xff]
        %v473 = vlaneseq
        %v474 = vand.u32 %v473, 127
        %vm475 = vcmp.lt.s32.totalorder %v474, 32
        %v476 = vsel %vm475, 1, 0
        %v477 = vcvt.s32.f32 %v476
        %v478 = vld [vmem:[%s435] sm:$0xff]
        %479 = vadd.xlane.f32.xlu0 %v478
        %v480 = vpop.xlane.xlu0 %479
        %v481 = vmul.f32 %v480, 0.03125
        %v482 = vsub.f32 %v478, %v481
        %v483 = vmul.f32 %v482, %v482
        %484 = vadd.xlane.f32.xlu0 %v483
        %v485 = vpop.xlane.xlu0 %484
        %v486 = vmul.f32 %v481, %v481
        %v487 = vmul.f32 %v486, 96.0
        %v488 = vsub.f32 %v485, %v487
        %v489 = vmul.f32 %v488, 0.03125
        %v490 = vadd.f32 %v489, 1e-05
        %v491 = vrsqrt.pop %v490
        %v493 = vlaneseq
        %v494 = vshrl.u32 %v493, 7
        %v495 = vsub.s32 0, %v494
        %v496 = vrot.slane %v437, %v495
        %v498 = vmul.f32 %v491, %v496
        %v499 = vmul.f32 %v482, %v498
        %v501 = vlaneseq
        %v502 = vshrl.u32 %v501, 7
        %v503 = vsub.s32 0, %v502
        %v504 = vrot.slane %v438, %v503
        %v506 = vadd.f32 %v499, %v504
        %v507 = vpack.c.bf16 %v506, %v506
        %509 = vset.pattern.permute.xlu0 0
        %510 = vperm.xlu0 %509, %v455
        %v511 = vpop.permute.xlu0 %510
        %514 = vset.pattern.permute.xlu0 0
        %515 = vperm.xlu0 %514, %v456
        %v516 = vpop.permute.xlu0 %515
        %519 = vset.pattern.permute.xlu0 0
        %520 = vperm.xlu0 %519, %v457
        %v521 = vpop.permute.xlu0 %520
        %524 = vset.pattern.permute.xlu0 0
        %525 = vperm.xlu0 %524, %v458
        %v526 = vpop.permute.xlu0 %525
        %529 = vset.pattern.permute.xlu0 0
        %530 = vperm.xlu0 %529, %v459
        %v531 = vpop.permute.xlu0 %530
        %534 = vset.pattern.permute.xlu0 0
        %535 = vperm.xlu0 %534, %v460
        %v536 = vpop.permute.xlu0 %535
        %539 = vset.pattern.permute.xlu0 0
        %540 = vperm.xlu0 %539, %v461
        %v541 = vpop.permute.xlu0 %540
        %544 = vset.pattern.permute.xlu0 0
        %545 = vperm.xlu0 %544, %v462
        %v546 = vpop.permute.xlu0 %545
        %549 = vset.pattern.permute.xlu0 0
        %550 = vperm.xlu0 %549, %v463
        %v551 = vpop.permute.xlu0 %550
        %554 = vset.pattern.permute.xlu0 0
        %555 = vperm.xlu0 %554, %v464
        %v556 = vpop.permute.xlu0 %555
        %559 = vset.pattern.permute.xlu0 0
        %560 = vperm.xlu0 %559, %v465
        %v561 = vpop.permute.xlu0 %560
        %564 = vset.pattern.permute.xlu0 0
        %565 = vperm.xlu0 %564, %v466
        %v566 = vpop.permute.xlu0 %565
        %569 = vset.pattern.permute.xlu0 0
        %570 = vperm.xlu0 %569, %v467
        %v571 = vpop.permute.xlu0 %570
        %574 = vset.pattern.permute.xlu0 0
        %575 = vperm.xlu0 %574, %v468
        %v576 = vpop.permute.xlu0 %575
        %579 = vset.pattern.permute.xlu0 0
        %580 = vperm.xlu0 %579, %v469
        %v581 = vpop.permute.xlu0 %580
        %584 = vset.pattern.permute.xlu0 0
        %585 = vperm.xlu0 %584, %v470
        %v586 = vpop.permute.xlu0 %585
        %v604 = vunpack.c.l.b16 %v439
        %v605 = vunpack.c.l.b16 %v440
        %v606 = vunpack.c.l.b16 %v441
        %v607 = vunpack.c.l.b16 %v442
        %v608 = vunpack.c.l.b16 %v443
        %v609 = vunpack.c.l.b16 %v444
        %v610 = vunpack.c.l.b16 %v445
        %v611 = vunpack.c.l.b16 %v446
        %v612 = vunpack.c.l.b16 %v447
        %v613 = vunpack.c.l.b16 %v448
        %v614 = vunpack.c.l.b16 %v449
        %v615 = vunpack.c.l.b16 %v450
        %v616 = vunpack.c.l.b16 %v451
        %v617 = vunpack.c.l.b16 %v452
        %v618 = vunpack.c.l.b16 %v453
        %v619 = vunpack.c.l.b16 %v454
        %v620 = vpack.c.b16 %v605, %v604
        %v621 = vpack.c.b16 %v607, %v606
        %v622 = vpack.c.b16 %v609, %v608
        %v623 = vpack.c.b16 %v611, %v610
        %v624 = vpack.c.b16 %v613, %v612
        %v625 = vpack.c.b16 %v615, %v614
        %v626 = vpack.c.b16 %v617, %v616
        %v627 = vpack.c.b16 %v619, %v618
        %vm628 = vcmask 64512
        %v630 = vsel %vm628, %v620, 0
        %v633 = vsel %vm628, %v621, 0
        %v636 = vsel %vm628, %v622, 0
        %v639 = vsel %vm628, %v623, 0
        %v642 = vsel %vm628, %v624, 0
        %v645 = vsel %vm628, %v625, 0
        %v648 = vsel %vm628, %v626, 0
        %v651 = vsel %vm628, %v627, 0
        %vm653 = vcmask 1043456
        %v655 = vsel %vm653, %v507, 0
        %657 = vmatprep.subr.bf16.mxu0 0
        %658 = vmatpush1.bf16.msra.mxu0 %v655
        %659 = vmatprep.subr.bf16.mxu0 0
        %660 = vmatpush1.bf16.msra.mxu0 0
        %661 = vmatprep.subr.bf16.mxu0 0
        %662 = vmatpush1.bf16.msra.mxu0 0
        %663 = vmatprep.subr.bf16.mxu0 0
        %664 = vmatpush1.bf16.msra.mxu0 0
        %665 = vmatprep.subr.bf16.mxu0 0
        %666 = vmatpush1.bf16.msra.mxu0 0
        %667 = vmatprep.subr.bf16.mxu0 0
        %668 = vmatpush1.bf16.msra.mxu0 0
        %669 = vmatprep.subr.bf16.mxu0 0
        %670 = vmatpush1.bf16.msra.mxu0 0
        %671 = vmatprep.subr.bf16.mxu0 0
        %672 = vmatpush1.bf16.msra.mxu0 0
        %673 = vmatprep.subr.bf16.mxu0 0
        %674 = vmatpush1.bf16.msra.mxu0 0
        %675 = vmatprep.subr.bf16.mxu0 0
        %676 = vmatpush1.bf16.msra.mxu0 0
        %677 = vmatprep.subr.bf16.mxu0 0
        %678 = vmatpush1.bf16.msra.mxu0 0
        %679 = vmatprep.subr.bf16.mxu0 0
        %680 = vmatpush1.bf16.msra.mxu0 0
        %681 = vmatprep.subr.bf16.mxu0 0
        %682 = vmatpush1.bf16.msra.mxu0 0
        %683 = vmatprep.subr.bf16.mxu0 0
        %684 = vmatpush1.bf16.msra.mxu0 0
        %685 = vmatprep.subr.bf16.mxu0 0
        %686 = vmatpush1.bf16.msra.mxu0 0
        %687 = vmatprep.subr.bf16.mxu0 0
        %688 = vmatpush1.bf16.msra.mxu0 0
        %689 = vmatprep.mubr.bf16.mxu0 0
        %690 = vmatmul.mubr.bf16.gmra.mrb[0].mxu0 %v630
        %v691 = vpop.f32.mrb[0].mxu0
        %v692 = vadd.f32 %v511, %v691
        %v693 = vpop.f32.mrb[0].mxu0
        %v694 = vpop.f32.mrb[0].mxu0
        %v695 = vadd.f32 %v516, %v694
        %v696 = vpop.f32.mrb[0].mxu0
        %697 = vmatprep.mubr.bf16.mxu0 0
        %698 = vmatmul.mubr.bf16.gmra.mrb[0].mxu0 %v633
        %v699 = vpop.f32.mrb[0].mxu0
        %v700 = vadd.f32 %v521, %v699
        %v701 = vpop.f32.mrb[0].mxu0
        %v702 = vpop.f32.mrb[0].mxu0
        %v703 = vadd.f32 %v526, %v702
        %v704 = vpop.f32.mrb[0].mxu0
        %705 = vmatprep.mubr.bf16.mxu0 0
        %706 = vmatmul.mubr.bf16.gmra.mrb[0].mxu0 %v636
        %v707 = vpop.f32.mrb[0].mxu0
        %v708 = vadd.f32 %v531, %v707
        %v709 = vpop.f32.mrb[0].mxu0
        %v710 = vpop.f32.mrb[0].mxu0
        %v711 = vadd.f32 %v536, %v710
        %v712 = vpop.f32.mrb[0].mxu0
        %713 = vmatprep.mubr.bf16.mxu0 0
        %714 = vmatmul.mubr.bf16.gmra.mrb[0].mxu0 %v639
        %v715 = vpop.f32.mrb[0].mxu0
        %v716 = vadd.f32 %v541, %v715
        %v717 = vpop.f32.mrb[0].mxu0
        %v718 = vpop.f32.mrb[0].mxu0
        %v719 = vadd.f32 %v546, %v718
        %v720 = vpop.f32.mrb[0].mxu0
        %721 = vmatprep.mubr.bf16.mxu0 0
        %722 = vmatmul.mubr.bf16.gmra.mrb[0].mxu0 %v642
        %v723 = vpop.f32.mrb[0].mxu0
        %v724 = vadd.f32 %v551, %v723
        %v725 = vpop.f32.mrb[0].mxu0
        %v726 = vpop.f32.mrb[0].mxu0
        %v727 = vadd.f32 %v556, %v726
        %v728 = vpop.f32.mrb[0].mxu0
        %729 = vmatprep.mubr.bf16.mxu0 0
        %730 = vmatmul.mubr.bf16.gmra.mrb[0].mxu0 %v645
        %v731 = vpop.f32.mrb[0].mxu0
        %v732 = vadd.f32 %v561, %v731
        %v733 = vpop.f32.mrb[0].mxu0
        %v734 = vpop.f32.mrb[0].mxu0
        %v735 = vadd.f32 %v566, %v734
        %v736 = vpop.f32.mrb[0].mxu0
        %737 = vmatprep.mubr.bf16.mxu0 0
        %738 = vmatmul.mubr.bf16.gmra.mrb[0].mxu0 %v648
        %v739 = vpop.f32.mrb[0].mxu0
        %v740 = vadd.f32 %v571, %v739
        %v741 = vpop.f32.mrb[0].mxu0
        %v742 = vpop.f32.mrb[0].mxu0
        %v743 = vadd.f32 %v576, %v742
        %v744 = vpop.f32.mrb[0].mxu0
        %745 = vmatprep.mubr.bf16.mxu0 0
        %746 = vmatmul.mubr.bf16.gmra.mrb[0].mxu0 %v651
        %v747 = vpop.f32.mrb[0].mxu0
        %v748 = vadd.f32 %v581, %v747
        %v749 = vpop.f32.mrb[0].mxu0
        %v750 = vpop.f32.mrb[0].mxu0
        %v751 = vadd.f32 %v586, %v750
        %v752 = vpop.f32.mrb[0].mxu0
        %753 = vdwg.mxu0
        %v754 = vmul.f32 %v692, 0.5
        %v755 = vmul.f32 %v695, 0.5
        %v756 = vmul.f32 %v700, 0.5
        %v757 = vmul.f32 %v703, 0.5
        %v758 = vmul.f32 %v708, 0.5
        %v759 = vmul.f32 %v711, 0.5
        %v760 = vmul.f32 %v716, 0.5
        %v761 = vmul.f32 %v719, 0.5
        %v762 = vmul.f32 %v724, 0.5
        %v763 = vmul.f32 %v727, 0.5
        %v764 = vmul.f32 %v732, 0.5
        %v765 = vmul.f32 %v735, 0.5
        %v766 = vmul.f32 %v740, 0.5
        %v767 = vmul.f32 %v743, 0.5
        %v768 = vmul.f32 %v748, 0.5
        %v769 = vmul.f32 %v751, 0.5
        %v770 = vmul.f32 %v692, 0.70710677
        %v771 = vmul.f32 %v695, 0.70710677
        %v772 = vmul.f32 %v700, 0.70710677
        %v773 = vmul.f32 %v703, 0.70710677
        %v774 = vmul.f32 %v708, 0.70710677
        %v775 = vmul.f32 %v711, 0.70710677
        %v776 = vmul.f32 %v716, 0.70710677
        %v777 = vmul.f32 %v719, 0.70710677
        %v778 = vmul.f32 %v724, 0.70710677
        %v779 = vmul.f32 %v727, 0.70710677
        %v780 = vmul.f32 %v732, 0.70710677
        %v781 = vmul.f32 %v735, 0.70710677
        %v782 = vmul.f32 %v740, 0.70710677
        %v783 = vmul.f32 %v743, 0.70710677
        %v784 = vmul.f32 %v748, 0.70710677
        %v785 = vmul.f32 %v751, 0.70710677
        %v786 = verf.f32.pop %v770
        %v787 = verf.f32.pop %v771
        %v788 = verf.f32.pop %v772
        %v789 = verf.f32.pop %v773
        %v790 = verf.f32.pop %v774
        %v791 = verf.f32.pop %v775
        %v792 = verf.f32.pop %v776
        %v793 = verf.f32.pop %v777
        %v794 = verf.f32.pop %v778
        %v795 = verf.f32.pop %v779
        %v796 = verf.f32.pop %v780
        %v797 = verf.f32.pop %v781
        %v798 = verf.f32.pop %v782
        %v799 = verf.f32.pop %v783
        %v800 = verf.f32.pop %v784
        %v801 = verf.f32.pop %v785
        %v802 = vadd.f32 %v786, 1.0
        %v803 = vadd.f32 %v787, 1.0
        %v804 = vadd.f32 %v788, 1.0
        %v805 = vadd.f32 %v789, 1.0
        %v806 = vadd.f32 %v790, 1.0
        %v807 = vadd.f32 %v791, 1.0
        %v808 = vadd.f32 %v792, 1.0
        %v809 = vadd.f32 %v793, 1.0
        %v810 = vadd.f32 %v794, 1.0
        %v811 = vadd.f32 %v795, 1.0
        %v812 = vadd.f32 %v796, 1.0
        %v813 = vadd.f32 %v797, 1.0
        %v814 = vadd.f32 %v798, 1.0
        %v815 = vadd.f32 %v799, 1.0
        %v816 = vadd.f32 %v800, 1.0
        %v817 = vadd.f32 %v801, 1.0
        %v818 = vmul.f32 %v754, %v802
        %v819 = vmul.f32 %v755, %v803
        %v820 = vmul.f32 %v756, %v804
        %v821 = vmul.f32 %v757, %v805
        %v822 = vmul.f32 %v758, %v806
        %v823 = vmul.f32 %v759, %v807
        %v824 = vmul.f32 %v760, %v808
        %v825 = vmul.f32 %v761, %v809
        %v826 = vmul.f32 %v762, %v810
        %v827 = vmul.f32 %v763, %v811
        %v828 = vmul.f32 %v764, %v812
        %v829 = vmul.f32 %v765, %v813
        %v830 = vmul.f32 %v766, %v814
        %v831 = vmul.f32 %v767, %v815
        %v832 = vmul.f32 %v768, %v816
        %v833 = vmul.f32 %v769, %v817
        %v834 = vpack.c.bf16 %v819, %v818
        %v835 = vpack.c.bf16 %v821, %v820
        %v836 = vpack.c.bf16 %v823, %v822
        %v837 = vpack.c.bf16 %v825, %v824
        %v838 = vpack.c.bf16 %v827, %v826
        %v839 = vpack.c.bf16 %v829, %v828
        %v840 = vpack.c.bf16 %v831, %v830
        %v841 = vpack.c.bf16 %v833, %v832
        %843 = vset.pattern.permute.xlu0 0
        %844 = vperm.xlu0 %843, %v472
        %v845 = vpop.permute.xlu0 %844
        %847 = vmatprep.subr.bf16.mxu0 0
        %848 = vmatpush1.bf16.msra.mxu0 %v834
        %849 = vmatprep.subr.bf16.mxu0 0
        %850 = vmatpush1.bf16.msra.mxu0 %v835
        %851 = vmatprep.subr.bf16.mxu0 0
        %852 = vmatpush1.bf16.msra.mxu0 %v836
        %853 = vmatprep.subr.bf16.mxu0 0
        %854 = vmatpush1.bf16.msra.mxu0 %v837
        %855 = vmatprep.subr.bf16.mxu0 0
        %856 = vmatpush1.bf16.msra.mxu0 %v838
        %857 = vmatprep.subr.bf16.mxu0 0
        %858 = vmatpush1.bf16.msra.mxu0 %v839
        %859 = vmatprep.subr.bf16.mxu0 0
        %860 = vmatpush1.bf16.msra.mxu0 %v840
        %861 = vmatprep.subr.bf16.mxu0 0
        %862 = vmatpush1.bf16.msra.mxu0 %v841
        %863 = vmatprep.subr.bf16.mxu0 0
        %864 = vmatpush1.bf16.msra.mxu0 0
        %865 = vmatprep.subr.bf16.mxu0 0
        %866 = vmatpush1.bf16.msra.mxu0 0
        %867 = vmatprep.subr.bf16.mxu0 0
        %868 = vmatpush1.bf16.msra.mxu0 0
        %869 = vmatprep.subr.bf16.mxu0 0
        %870 = vmatpush1.bf16.msra.mxu0 0
        %871 = vmatprep.subr.bf16.mxu0 0
        %872 = vmatpush1.bf16.msra.mxu0 0
        %873 = vmatprep.subr.bf16.mxu0 0
        %874 = vmatpush1.bf16.msra.mxu0 0
        %875 = vmatprep.subr.bf16.mxu0 0
        %876 = vmatpush1.bf16.msra.mxu0 0
        %877 = vmatprep.subr.bf16.mxu0 0
        %878 = vmatpush1.bf16.msra.mxu0 0
        %879 = vmatprep.mubr.bf16.mxu0 0
        %880 = vmatmul.mubr.bf16.gmra.mrb[0].mxu0 %v471
        %v881 = vpop.f32.mrb[0].mxu0
        %v882 = vadd.f32 %v845, %v881
        %v883 = vpop.f32.mrb[0].mxu0
        %v884 = vpop.f32.mrb[0].mxu0
        %v885 = vpop.f32.mrb[0].mxu0
        %886 = vdwg.mxu0
        %v887 = vmul.f32 %v882, %v477
        %v888 = vadd.f32 %v478, %v887
        %889 = vst [vmem:[#allocation2] sm:$0xff] %v888
        %v890 = vld [vmem:[#allocation2] sm:$0xff]
        %v891 = vld [vmem:[%s7] sm:$0x1]
        %v892 = vld [vmem:[%s8] sm:$0x1]
        %893 = vadd.xlane.f32.xlu0 %v890
        %v894 = vpop.xlane.xlu0 %893
        %v895 = vmul.f32 %v894, 0.03125
        %v896 = vsub.f32 %v890, %v895
        %v897 = vmul.f32 %v896, %v896
        %898 = vadd.xlane.f32.xlu0 %v897
        %v899 = vpop.xlane.xlu0 %898
        %v900 = vmul.f32 %v895, %v895
        %v901 = vmul.f32 %v900, 96.0
        %v902 = vsub.f32 %v899, %v901
        %v903 = vmul.f32 %v902, 0.03125
        %v904 = vadd.f32 %v903, 1e-05
        %v905 = vrsqrt.pop %v904
        %v907 = vlaneseq
        %v908 = vshrl.u32 %v907, 7
        %v909 = vsub.s32 0, %v908
        %v910 = vrot.slane %v891, %v909
        %v912 = vmul.f32 %v905, %v910
        %v913 = vmul.f32 %v896, %v912
        %v915 = vlaneseq
        %v916 = vshrl.u32 %v915, 7
        %v917 = vsub.s32 0, %v916
        %v918 = vrot.slane %v892, %v917
        %v920 = vadd.f32 %v913, %v918
        %v921 = vpack.c.bf16 %v920, %v920
        %v922 = vld [vmem:[%s9] sm:$0xf]
        %v923 = vld [vmem:[%s9 + $0x4] sm:$0xf]
        %v924 = vld [vmem:[%s9 + $0x8] sm:$0xf]
        %v925 = vld [vmem:[%s9 + $0xc] sm:$0xf]
        %v926 = vld [vmem:[%s9 + $0x10] sm:$0xf]
        %v927 = vld [vmem:[%s9 + $0x14] sm:$0xf]
        %v928 = vld [vmem:[%s9 + $0x18] sm:$0xf]
        %v929 = vld [vmem:[%s9 + $0x1c] sm:$0xf]
        %v930 = vld [vmem:[%s9 + $0x20] sm:$0xf]
        %v931 = vld [vmem:[%s9 + $0x24] sm:$0xf]
        %v932 = vld [vmem:[%s9 + $0x28] sm:$0xf]
        %v933 = vld [vmem:[%s9 + $0x2c] sm:$0xf]
        %v934 = vld [vmem:[%s9 + $0x30] sm:$0xf]
        %v935 = vld [vmem:[%s9 + $0x34] sm:$0xf]
        %v936 = vld [vmem:[%s9 + $0x38] sm:$0xf]
        %v937 = vld [vmem:[%s9 + $0x3c] sm:$0xf]
        %v938 = vld [vmem:[%s10] sm:$0x1]
        %v940 = vlaneseq
        %v941 = vshrl.u32 %v940, 7
        %v942 = vsub.s32 0, %v941
        %v943 = vrot.slane %v938, %v942
        %v961 = vunpack.c.l.b16 %v922
        %v962 = vunpack.c.l.b16 %v923
        %v963 = vunpack.c.l.b16 %v924
        %v964 = vunpack.c.l.b16 %v925
        %v965 = vunpack.c.l.b16 %v926
        %v966 = vunpack.c.l.b16 %v927
        %v967 = vunpack.c.l.b16 %v928
        %v968 = vunpack.c.l.b16 %v929
        %v969 = vunpack.c.l.b16 %v930
        %v970 = vunpack.c.l.b16 %v931
        %v971 = vunpack.c.l.b16 %v932
        %v972 = vunpack.c.l.b16 %v933
        %v973 = vunpack.c.l.b16 %v934
        %v974 = vunpack.c.l.b16 %v935
        %v975 = vunpack.c.l.b16 %v936
        %v976 = vunpack.c.l.b16 %v937
        %v977 = vpack.c.b16 %v962, %v961
        %v978 = vpack.c.b16 %v964, %v963
        %v979 = vpack.c.b16 %v966, %v965
        %v980 = vpack.c.b16 %v968, %v967
        %v981 = vpack.c.b16 %v970, %v969
        %v982 = vpack.c.b16 %v972, %v971
        %v983 = vpack.c.b16 %v974, %v973
        %v984 = vpack.c.b16 %v976, %v975
        %993 = vmatprep.subr.bf16.mxu0 0
        %994 = vmatpush1.bf16.msra.mxu0 %v977
        %995 = vmatprep.subr.bf16.mxu0 0
        %996 = vmatpush1.bf16.msra.mxu0 %v978
        %997 = vmatprep.subr.bf16.mxu0 0
        %998 = vmatpush1.bf16.msra.mxu0 %v979
        %999 = vmatprep.subr.bf16.mxu0 0
        %1000 = vmatpush1.bf16.msra.mxu0 %v980
        %1001 = vmatprep.subr.bf16.mxu0 0
        %1002 = vmatpush1.bf16.msra.mxu0 %v981
        %1003 = vmatprep.subr.bf16.mxu0 0
        %1004 = vmatpush1.bf16.msra.mxu0 %v982
        %1005 = vmatprep.subr.bf16.mxu0 0
        %1006 = vmatpush1.bf16.msra.mxu0 %v983
        %1007 = vmatprep.subr.bf16.mxu0 0
        %1008 = vmatpush1.bf16.msra.mxu0 %v984
        %1009 = vmatprep.subr.bf16.mxu0 0
        %1010 = vmatpush1.bf16.msra.mxu0 0
        %1011 = vmatprep.subr.bf16.mxu0 0
        %1012 = vmatpush1.bf16.msra.mxu0 0
        %1013 = vmatprep.subr.bf16.mxu0 0
        %1014 = vmatpush1.bf16.msra.mxu0 0
        %1015 = vmatprep.subr.bf16.mxu0 0
        %1016 = vmatpush1.bf16.msra.mxu0 0
        %1017 = vmatprep.subr.bf16.mxu0 0
        %1018 = vmatpush1.bf16.msra.mxu0 0
        %1019 = vmatprep.subr.bf16.mxu0 0
        %1020 = vmatpush1.bf16.msra.mxu0 0
        %1021 = vmatprep.subr.bf16.mxu0 0
        %1022 = vmatpush1.bf16.msra.mxu0 0
        %1023 = vmatprep.subr.bf16.mxu0 0
        %1024 = vmatpush1.bf16.msra.mxu0 0
        %1025 = vmatprep.mubr.bf16.mxu0 0
        %1026 = vmatmul.mubr.bf16.gmra.mrb[0].mxu0 %v921
        %v1027 = vpop.f32.mrb[0].mxu0
        %v1028 = vadd.f32 %v943, %v1027
        %v1029 = vpop.f32.mrb[0].mxu0
        %v1030 = vpop.f32.mrb[0].mxu0
        %v1031 = vpop.f32.mrb[0].mxu0
        %1032 = vdwg.mxu0
        %v1033 = vmul.f32 %v1028, 0.5
        %v1034 = vmul.f32 %v1028, 0.70710677
        %v1035 = verf.f32.pop %v1034
        %v1036 = vadd.f32 %v1035, 1.0
        %v1037 = vmul.f32 %v1033, %v1036
        %v1038 = vpack.c.bf16 %v1037, %v1037
        %v1039 = vld [vmem:[%s11] sm:$0xf]
        %v1040 = vld [vmem:[%s11 + $0x4] sm:$0xf]
        %v1041 = vld [vmem:[%s11 + $0x8] sm:$0xf]
        %v1042 = vld [vmem:[%s11 + $0xc] sm:$0xf]
        %v1043 = vld [vmem:[%s11 + $0x10] sm:$0xf]
        %v1044 = vld [vmem:[%s11 + $0x14] sm:$0xf]
        %v1045 = vld [vmem:[%s11 + $0x18] sm:$0xf]
        %v1046 = vld [vmem:[%s11 + $0x1c] sm:$0xf]
        %v1047 = vld [vmem:[%s11 + $0x20] sm:$0xf]
        %v1048 = vld [vmem:[%s11 + $0x24] sm:$0xf]
        %v1049 = vld [vmem:[%s11 + $0x28] sm:$0xf]
        %v1050 = vld [vmem:[%s11 + $0x2c] sm:$0xf]
        %v1051 = vld [vmem:[%s11 + $0x30] sm:$0xf]
        %v1052 = vld [vmem:[%s11 + $0x34] sm:$0xf]
        %v1053 = vld [vmem:[%s11 + $0x38] sm:$0xf]
        %v1054 = vld [vmem:[%s11 + $0x3c] sm:$0xf]
        %v1055 = vld [vmem:[%s12] sm:$0x1]
        %v1057 = vlaneseq
        %v1058 = vshrl.u32 %v1057, 7
        %v1059 = vsub.s32 0, %v1058
        %v1060 = vrot.slane %v1055, %v1059
        %v1078 = vunpack.c.l.b16 %v1039
        %v1079 = vunpack.c.l.b16 %v1040
        %v1080 = vunpack.c.l.b16 %v1041
        %v1081 = vunpack.c.l.b16 %v1042
        %v1082 = vunpack.c.l.b16 %v1043
        %v1083 = vunpack.c.l.b16 %v1044
        %v1084 = vunpack.c.l.b16 %v1045
        %v1085 = vunpack.c.l.b16 %v1046
        %v1086 = vunpack.c.l.b16 %v1047
        %v1087 = vunpack.c.l.b16 %v1048
        %v1088 = vunpack.c.l.b16 %v1049
        %v1089 = vunpack.c.l.b16 %v1050
        %v1090 = vunpack.c.l.b16 %v1051
        %v1091 = vunpack.c.l.b16 %v1052
        %v1092 = vunpack.c.l.b16 %v1053
        %v1093 = vunpack.c.l.b16 %v1054
        %v1094 = vpack.c.b16 %v1079, %v1078
        %v1095 = vpack.c.b16 %v1081, %v1080
        %v1096 = vpack.c.b16 %v1083, %v1082
        %v1097 = vpack.c.b16 %v1085, %v1084
        %v1098 = vpack.c.b16 %v1087, %v1086
        %v1099 = vpack.c.b16 %v1089, %v1088
        %v1100 = vpack.c.b16 %v1091, %v1090
        %v1101 = vpack.c.b16 %v1093, %v1092
        %1110 = vmatprep.subr.bf16.mxu0 0
        %1111 = vmatpush1.bf16.msra.mxu0 %v1094
        %1112 = vmatprep.subr.bf16.mxu0 0
        %1113 = vmatpush1.bf16.msra.mxu0 %v1095
        %1114 = vmatprep.subr.bf16.mxu0 0
        %1115 = vmatpush1.bf16.msra.mxu0 %v1096
        %1116 = vmatprep.subr.bf16.mxu0 0
        %1117 = vmatpush1.bf16.msra.mxu0 %v1097
        %1118 = vmatprep.subr.bf16.mxu0 0
        %1119 = vmatpush1.bf16.msra.mxu0 %v1098
        %1120 = vmatprep.subr.bf16.mxu0 0
        %1121 = vmatpush1.bf16.msra.mxu0 %v1099
        %1122 = vmatprep.subr.bf16.mxu0 0
        %1123 = vmatpush1.bf16.msra.mxu0 %v1100
        %1124 = vmatprep.subr.bf16.mxu0 0
        %1125 = vmatpush1.bf16.msra.mxu0 %v1101
        %1126 = vmatprep.subr.bf16.mxu0 0
        %1127 = vmatpush1.bf16.msra.mxu0 0
        %1128 = vmatprep.subr.bf16.mxu0 0
        %1129 = vmatpush1.bf16.msra.mxu0 0
        %1130 = vmatprep.subr.bf16.mxu0 0
        %1131 = vmatpush1.bf16.msra.mxu0 0
        %1132 = vmatprep.subr.bf16.mxu0 0
        %1133 = vmatpush1.bf16.msra.mxu0 0
        %1134 = vmatprep.subr.bf16.mxu0 0
        %1135 = vmatpush1.bf16.msra.mxu0 0
        %1136 = vmatprep.subr.bf16.mxu0 0
        %1137 = vmatpush1.bf16.msra.mxu0 0
        %1138 = vmatprep.subr.bf16.mxu0 0
        %1139 = vmatpush1.bf16.msra.mxu0 0
        %1140 = vmatprep.subr.bf16.mxu0 0
        %1141 = vmatpush1.bf16.msra.mxu0 0
        %1142 = vmatprep.mubr.bf16.mxu0 0
        %1143 = vmatmul.mubr.bf16.gmra.mrb[0].mxu0 %v1038
        %v1144 = vpop.f32.mrb[0].mxu0
        %v1145 = vadd.f32 %v1060, %v1144
        %v1146 = vpop.f32.mrb[0].mxu0
        %v1147 = vpop.f32.mrb[0].mxu0
        %v1148 = vpop.f32.mrb[0].mxu0
        %1149 = vdwg.mxu0
        %v1150 = vadd.f32 %v890, %v1145
        %1151 = vst [vmem:[%s431] sm:$0xff] %v1150
        %s1152 = sand.u32 %s313, 1
        %s1153 = scalar_lea.sflag [#allocation4], %s1152
        %s1154 = sand.u32 %s313, 1
        %s1155 = smul.addr %s1154, 8
        %s1156 = scalar_lea.vmem [#allocation3], %s1155
        // Predicated region
        $region73: #{tpu_custom_call.1} parent=71 // pred_check
          %p1157 = pneg %p323
        $region74: #{tpu_custom_call.1} parent=71 // pred_check_branch
          %1159 = sbr.rel (%p1157) target = $region76
        $region75: #{tpu_custom_call.1} parent=71 // pred_region
          %s1161 = ssub.s32 128, 128
          %1162 = vsyncadd %s1153, %s1161
          %s1163 = smul.addr %s27, 128
          %s1164 = scalar_lea.hbm %s13, %s1163
          %s1166 = sshll.u32 %s1156, 4
          %s1167 = int_to_ptr.vmem [resolvable:$true] %s1166
          %1169 = dma.vmem_to_hbm [thread:$0]  %s1167, 128, %s1164, %s1153
        $region76: #{tpu_custom_call.1} parent=71 // pred_fallthru
          _
      $region72: #{tpu_custom_call.1} parent=5 // pred_fallthru
        _
      %p1170 = scmp.le.s32.totalorder 2, %s22
      // Predicated region
      $region77: #{tpu_custom_call.1} parent=5 // pred_check
        %p1171 = pneg %p1170
      $region78: #{tpu_custom_call.1} parent=5 // pred_check_branch
        %1173 = sbr.rel (%p1171) target = $region80
      $region79: #{tpu_custom_call.1} parent=5 // pred_region
        %s1174 = ssub.s32 %s22, 2
        // Predicated region
        $region81: #{tpu_custom_call.1} parent=79 // pred_check
          %p1175 = pneg %p329
        $region82: #{tpu_custom_call.1} parent=79 // pred_check_branch
          %1177 = sbr.rel (%p1175) target = $region84
        $region83: #{tpu_custom_call.1} parent=79 // pred_region
          %s1178 = sand.u32 %s314, 1
          %s1179 = scalar_lea.sflag [#allocation4], %s1178
          %s1180 = sand.u32 %s314, 1
          %s1181 = smul.addr %s1180, 8
          %s1182 = scalar_lea.vmem [#allocation3], %s1181
          %1183 = dma.done %s1179, 128
        $region84: #{tpu_custom_call.1} parent=79 // pred_fallthru
          _
      $region80: #{tpu_custom_call.1} parent=5 // pred_fallthru
        _
    $region6: #{tpu_custom_call.1} parent=1 // loop_footer
      %s26 = sadd.s32 1, %s22
    $region7: #{tpu_custom_call.1} parent=1 // loop_footer_branch
      %21 = sbr.rel target = $region3
    $region8: #{tpu_custom_call.1} parent=1 // loop_exit
      _
    %1184 = vsyncpa [#allocation4], 1
    %s1185 = scalar_lea.sflag [#allocation4], 1
    %1186 = vsyncpa %s1185, 1

// kernel: tpu_custom_call.1
$region0: #{tpu_custom_call.1}
  #allocation0 [shape = 'u32[]', space=smem, size = 0x4, offset = 0x4, fixed_abs, tag = 'smem constant byte address 0x4 - core index']
  #allocation1 [shape = 'u32[144,128]{1,0:T(1,128)}', space=vmem, size = 0x12000, scoped, tag = 'internal scratch']
  #allocation2 [shape = 'f32[1,8,128]{2,1,0:T(8,128)}', space=vmem, size = 0x1000, scoped, tag = 'scratch operand']
  %s0 = inlined_call_operand.vmem [shape: f32[2,8,128], index: 0, kind: input, shape index: {}]
  %s1 = inlined_call_operand.vmem [shape: f32[1,128], index: 1, kind: input, shape index: {}]
  %s2 = inlined_call_operand.vmem [shape: f32[1,128], index: 2, kind: input, shape index: {}]
  %s3 = inlined_call_operand.vmem [shape: bf16[128,8], index: 3, kind: input, shape index: {}]
  %s4 = inlined_call_operand.vmem [shape: f32[128,1], index: 4, kind: input, shape index: {}]
  %s5 = inlined_call_operand.vmem [shape: bf16[8,128], index: 5, kind: input, shape index: {}]
  %s6 = inlined_call_operand.vmem [shape: f32[8,1], index: 6, kind: input, shape index: {}]
  %s7 = inlined_call_operand.vmem [shape: f32[1,128], index: 7, kind: input, shape index: {}]
  %s8 = inlined_call_operand.vmem [shape: f32[1,128], index: 8, kind: input, shape index: {}]
  %s9 = inlined_call_operand.vmem [shape: bf16[128,128], index: 9, kind: input, shape index: {}]
  %s10 = inlined_call_operand.vmem [shape: f32[1,128], index: 10, kind: input, shape index: {}]
  %s11 = inlined_call_operand.vmem [shape: bf16[128,128], index: 11, kind: input, shape index: {}]
  %s12 = inlined_call_operand.vmem [shape: f32[1,128], index: 12, kind: input, shape index: {}]
  %s13 = inlined_call_operand.hbm [shape: f32[2,8,128], index: 13, kind: output, shape index: {}]
  %s14 = sld [smem:[#allocation0]]
  $region85: #{tpu_custom_call.1} parent=0
    _
  %s16 = ssub.s32 1, %s14
  %s17 = scalar_select 0, %s16, %s14
  $region1: #{tpu_custom_call.1} parent=0
    #allocation3 [shape = 'u8[8192]{0}', space=vmem, size = 0x2000, scoped, tag = 'output window, operand 0']
    #allocation4 [shape = 's32[2]{0}', space=sflag, size = 0x8, scoped, tag = 'scoped memory for tpu_custom_call.1']
    %18 = vsyncpa [#allocation4], 0
    %s19 = scalar_lea.sflag [#allocation4], 1
    %20 = vsyncpa %s19, 0
    loop: start=0, step=1, limit=4
    $region2: #{tpu_custom_call.1} parent=1 // loop_pre_header
      _
    $region3: #{tpu_custom_call.1} parent=1 // loop_header
      %s22 = sphi 0, %s26
      %p23 = scmp.ge.s32.totalorder %s22, 4
      %s32 = sphi 0, %s34
      %s35 = sphi 0, %s32
      %s36 = sphi 0, %s35
      %s52 = sphi 0, %s36
      %s56 = sphi 0, %s56
      %s58 = sphi 0, %s56
      %s59 = sphi 0, %s58
      %s73 = sphi 0, %s59
      %s77 = sphi 0, %s77
      %s79 = sphi 0, %s77
      %s80 = sphi 0, %s79
      %s94 = sphi 0, %s80
      %s98 = sphi 0, %s98
      %s100 = sphi 0, %s98
      %s101 = sphi 0, %s100
      %s115 = sphi 0, %s101
      %s119 = sphi 0, %s119
      %s121 = sphi 0, %s119
      %s122 = sphi 0, %s121
      %s136 = sphi 0, %s122
      %s140 = sphi 0, %s140
      %s142 = sphi 0, %s140
      %s143 = sphi 0, %s142
      %s157 = sphi 0, %s143
      %s161 = sphi 0, %s161
      %s163 = sphi 0, %s161
      %s164 = sphi 0, %s163
      %s178 = sphi 0, %s164
      %s182 = sphi 0, %s182
      %s184 = sphi 0, %s182
      %s185 = sphi 0, %s184
      %s199 = sphi 0, %s185
      %s203 = sphi 0, %s203
      %s205 = sphi 0, %s203
      %s206 = sphi 0, %s205
      %s220 = sphi 0, %s206
      %s224 = sphi 0, %s224
      %s226 = sphi 0, %s224
      %s227 = sphi 0, %s226
      %s241 = sphi 0, %s227
      %s245 = sphi 0, %s245
      %s247 = sphi 0, %s245
      %s248 = sphi 0, %s247
      %s262 = sphi 0, %s248
      %s266 = sphi 0, %s266
      %s268 = sphi 0, %s266
      %s269 = sphi 0, %s268
      %s283 = sphi 0, %s269
      %s287 = sphi 0, %s287
      %s289 = sphi 0, %s287
      %s290 = sphi 0, %s289
      %s304 = sphi 0, %s290
      %s310 = sphi 0, %s312
      %s313 = sphi 0, %s310
      %s314 = sphi 0, %s313
      %s330 = sphi 0, %s314
    $region4: #{tpu_custom_call.1} parent=1 // loop_header_branch
      %25 = sbr.rel (%p23) target = $region8
    $region5: #{tpu_custom_call.1} parent=1 // loop_body
      %s27 = ssub.s32 %s22, 1
      %s28 = ssub.s32 %s22, 2
      %s29 = sadd.s32 %s22, 1
      %s30 = ssub.s32 %s22, %s29
      %p31 = scmp.eq.s32.totalorder %s30, 0
      %s33 = sadd.s32 %s32, 1
      %s34 = scalar_select %p31, %s32, %s33
      %p37 = pneg %p31
      %p38 = scmp.eq.s32.totalorder %s22, 1
      %p39 = por %p37, %p38
      %p40 = scmp.ne.s32.totalorder %s32, %s35
      %p41 = scmp.eq.s32.totalorder %s22, 0
      %p42 = por %p40, %p41
      %p43 = scmp.ne.s32.totalorder %s32, %s35
      %p44 = scmp.eq.s32.totalorder %s27, 1
      %p45 = por %p43, %p44
      %p46 = scmp.ne.s32.totalorder %s35, %s36
      %p47 = scmp.eq.s32.totalorder %s27, 0
      %p48 = por %p46, %p47
      %p49 = scmp.ne.s32.totalorder %s35, %s36
      %p50 = scmp.eq.s32.totalorder %s28, 1
      %p51 = por %p49, %p50
      %p53 = scmp.ne.s32.totalorder %s36, %s52
      %p54 = scmp.eq.s32.totalorder %s28, 0
      %p55 = por %p53, %p54
      %s57 = sadd.s32 %s56, 1
      %p60 = scmp.eq.s32.totalorder %s22, 1
      %p61 = scmp.ne.s32.totalorder %s56, %s58
      %p62 = scmp.eq.s32.totalorder %s22, 0
      %p63 = por %p61, %p62
      %p64 = scmp.ne.s32.totalorder %s56, %s58
      %p65 = scmp.eq.s32.totalorder %s27, 1
      %p66 = por %p64, %p65
      %p67 = scmp.ne.s32.totalorder %s58, %s59
      %p68 = scmp.eq.s32.totalorder %s27, 0
      %p69 = por %p67, %p68
      %p70 = scmp.ne.s32.totalorder %s58, %s59
      %p71 = scmp.eq.s32.totalorder %s28, 1
      %p72 = por %p70, %p71
      %p74 = scmp.ne.s32.totalorder %s59, %s73
      %p75 = scmp.eq.s32.totalorder %s28, 0
      %p76 = por %p74, %p75
      %s78 = sadd.s32 %s77, 1
      %p81 = scmp.eq.s32.totalorder %s22, 1
      %p82 = scmp.ne.s32.totalorder %s77, %s79
      %p83 = scmp.eq.s32.totalorder %s22, 0
      %p84 = por %p82, %p83
      %p85 = scmp.ne.s32.totalorder %s77, %s79
      %p86 = scmp.eq.s32.totalorder %s27, 1
      %p87 = por %p85, %p86
      %p88 = scmp.ne.s32.totalorder %s79, %s80
      %p89 = scmp.eq.s32.totalorder %s27, 0
      %p90 = por %p88, %p89
      %p91 = scmp.ne.s32.totalorder %s79, %s80
      %p92 = scmp.eq.s32.totalorder %s28, 1
      %p93 = por %p91, %p92
      %p95 = scmp.ne.s32.totalorder %s80, %s94
      %p96 = scmp.eq.s32.totalorder %s28, 0
      %p97 = por %p95, %p96
      %s99 = sadd.s32 %s98, 1
      %p102 = scmp.eq.s32.totalorder %s22, 1
      %p103 = scmp.ne.s32.totalorder %s98, %s100
      %p104 = scmp.eq.s32.totalorder %s22, 0
      %p105 = por %p103, %p104
      %p106 = scmp.ne.s32.totalorder %s98, %s100
      %p107 = scmp.eq.s32.totalorder %s27, 1
      %p108 = por %p106, %p107
      %p109 = scmp.ne.s32.totalorder %s100, %s101
      %p110 = scmp.eq.s32.totalorder %s27, 0
      %p111 = por %p109, %p110
      %p112 = scmp.ne.s32.totalorder %s100, %s101
      %p113 = scmp.eq.s32.totalorder %s28, 1
      %p114 = por %p112, %p113
      %p116 = scmp.ne.s32.totalorder %s101, %s115
      %p117 = scmp.eq.s32.totalorder %s28, 0
      %p118 = por %p116, %p117
      %s120 = sadd.s32 %s119, 1
      %p123 = scmp.eq.s32.totalorder %s22, 1
      %p124 = scmp.ne.s32.totalorder %s119, %s121
      %p125 = scmp.eq.s32.totalorder %s22, 0
      %p126 = por %p124, %p125
      %p127 = scmp.ne.s32.totalorder %s119, %s121
      %p128 = scmp.eq.s32.totalorder %s27, 1
      %p129 = por %p127, %p128
      %p130 = scmp.ne.s32.totalorder %s121, %s122
      %p131 = scmp.eq.s32.totalorder %s27, 0
      %p132 = por %p130, %p131
      %p133 = scmp.ne.s32.totalorder %s121, %s122
      %p134 = scmp.eq.s32.totalorder %s28, 1
      %p135 = por %p133, %p134
      %p137 = scmp.ne.s32.totalorder %s122, %s136
      %p138 = scmp.eq.s32.totalorder %s28, 0
      %p139 = por %p137, %p138
      %s141 = sadd.s32 %s140, 1
      %p144 = scmp.eq.s32.totalorder %s22, 1
      %p145 = scmp.ne.s32.totalorder %s140, %s142
      %p146 = scmp.eq.s32.totalorder %s22, 0
      %p147 = por %p145, %p146
      %p148 = scmp.ne.s32.totalorder %s140, %s142
      %p149 = scmp.eq.s32.totalorder %s27, 1
      %p150 = por %p148, %p149
      %p151 = scmp.ne.s32.totalorder %s142, %s143
      %p152 = scmp.eq.s32.totalorder %s27, 0
      %p153 = por %p151, %p152
      %p154 = scmp.ne.s32.totalorder %s142, %s143
      %p155 = scmp.eq.s32.totalorder %s28, 1
      %p156 = por %p154, %p155
      %p158 = scmp.ne.s32.totalorder %s143, %s157
      %p159 = scmp.eq.s32.totalorder %s28, 0
      %p160 = por %p158, %p159
      %s162 = sadd.s32 %s161, 1
      %p165 = scmp.eq.s32.totalorder %s22, 1
      %p166 = scmp.ne.s32.totalorder %s161, %s163
      %p167 = scmp.eq.s32.totalorder %s22, 0
      %p168 = por %p166, %p167
      %p169 = scmp.ne.s32.totalorder %s161, %s163
      %p170 = scmp.eq.s32.totalorder %s27, 1
      %p171 = por %p169, %p170
      %p172 = scmp.ne.s32.totalorder %s163, %s164
      %p173 = scmp.eq.s32.totalorder %s27, 0
      %p174 = por %p172, %p173
      %p175 = scmp.ne.s32.totalorder %s163, %s164
      %p176 = scmp.eq.s32.totalorder %s28, 1
      %p177 = por %p175, %p176
      %p179 = scmp.ne.s32.totalorder %s164, %s178
      %p180 = scmp.eq.s32.totalorder %s28, 0
      %p181 = por %p179, %p180
      %s183 = sadd.s32 %s182, 1
      %p186 = scmp.eq.s32.totalorder %s22, 1
      %p187 = scmp.ne.s32.totalorder %s182, %s184
      %p188 = scmp.eq.s32.totalorder %s22, 0
      %p189 = por %p187, %p188
      %p190 = scmp.ne.s32.totalorder %s182, %s184
      %p191 = scmp.eq.s32.totalorder %s27, 1
      %p192 = por %p190, %p191
      %p193 = scmp.ne.s32.totalorder %s184, %s185
      %p194 = scmp.eq.s32.totalorder %s27, 0
      %p195 = por %p193, %p194
      %p196 = scmp.ne.s32.totalorder %s184, %s185
      %p197 = scmp.eq.s32.totalorder %s28, 1
      %p198 = por %p196, %p197
      %p200 = scmp.ne.s32.totalorder %s185, %s199
      %p201 = scmp.eq.s32.totalorder %s28, 0
      %p202 = por %p200, %p201
      %s204 = sadd.s32 %s203, 1
      %p207 = scmp.eq.s32.totalorder %s22, 1
      %p208 = scmp.ne.s32.totalorder %s203, %s205
      %p209 = scmp.eq.s32.totalorder %s22, 0
      %p210 = por %p208, %p209
      %p211 = scmp.ne.s32.totalorder %s203, %s205
      %p212 = scmp.eq.s32.totalorder %s27, 1
      %p213 = por %p211, %p212
      %p214 = scmp.ne.s32.totalorder %s205, %s206
      %p215 = scmp.eq.s32.totalorder %s27, 0
      %p216 = por %p214, %p215
      %p217 = scmp.ne.s32.totalorder %s205, %s206
      %p218 = scmp.eq.s32.totalorder %s28, 1
      %p219 = por %p217, %p218
      %p221 = scmp.ne.s32.totalorder %s206, %s220
      %p222 = scmp.eq.s32.totalorder %s28, 0
      %p223 = por %p221, %p222
      %s225 = sadd.s32 %s224, 1
      %p228 = scmp.eq.s32.totalorder %s22, 1
      %p229 = scmp.ne.s32.totalorder %s224, %s226
      %p230 = scmp.eq.s32.totalorder %s22, 0
      %p231 = por %p229, %p230
      %p232 = scmp.ne.s32.totalorder %s224, %s226
      %p233 = scmp.eq.s32.totalorder %s27, 1
      %p234 = por %p232, %p233
      %p235 = scmp.ne.s32.totalorder %s226, %s227
      %p236 = scmp.eq.s32.totalorder %s27, 0
      %p237 = por %p235, %p236
      %p238 = scmp.ne.s32.totalorder %s226, %s227
      %p239 = scmp.eq.s32.totalorder %s28, 1
      %p240 = por %p238, %p239
      %p242 = scmp.ne.s32.totalorder %s227, %s241
      %p243 = scmp.eq.s32.totalorder %s28, 0
      %p244 = por %p242, %p243
      %s246 = sadd.s32 %s245, 1
      %p249 = scmp.eq.s32.totalorder %s22, 1
      %p250 = scmp.ne.s32.totalorder %s245, %s247
      %p251 = scmp.eq.s32.totalorder %s22, 0
      %p252 = por %p250, %p251
      %p253 = scmp.ne.s32.totalorder %s245, %s247
      %p254 = scmp.eq.s32.totalorder %s27, 1
      %p255 = por %p253, %p254
      %p256 = scmp.ne.s32.totalorder %s247, %s248
      %p257 = scmp.eq.s32.totalorder %s27, 0
      %p258 = por %p256, %p257
      %p259 = scmp.ne.s32.totalorder %s247, %s248
      %p260 = scmp.eq.s32.totalorder %s28, 1
      %p261 = por %p259, %p260
      %p263 = scmp.ne.s32.totalorder %s248, %s262
      %p264 = scmp.eq.s32.totalorder %s28, 0
      %p265 = por %p263, %p264
      %s267 = sadd.s32 %s266, 1
      %p270 = scmp.eq.s32.totalorder %s22, 1
      %p271 = scmp.ne.s32.totalorder %s266, %s268
      %p272 = scmp.eq.s32.totalorder %s22, 0
      %p273 = por %p271, %p272
      %p274 = scmp.ne.s32.totalorder %s266, %s268
      %p275 = scmp.eq.s32.totalorder %s27, 1
      %p276 = por %p274, %p275
      %p277 = scmp.ne.s32.totalorder %s268, %s269
      %p278 = scmp.eq.s32.totalorder %s27, 0
      %p279 = por %p277, %p278
      %p280 = scmp.ne.s32.totalorder %s268, %s269
      %p281 = scmp.eq.s32.totalorder %s28, 1
      %p282 = por %p280, %p281
      %p284 = scmp.ne.s32.totalorder %s269, %s283
      %p285 = scmp.eq.s32.totalorder %s28, 0
      %p286 = por %p284, %p285
      %s288 = sadd.s32 %s287, 1
      %p291 = scmp.eq.s32.totalorder %s22, 1
      %p292 = scmp.ne.s32.totalorder %s287, %s289
      %p293 = scmp.eq.s32.totalorder %s22, 0
      %p294 = por %p292, %p293
      %p295 = scmp.ne.s32.totalorder %s287, %s289
      %p296 = scmp.eq.s32.totalorder %s27, 1
      %p297 = por %p295, %p296
      %p298 = scmp.ne.s32.totalorder %s289, %s290
      %p299 = scmp.eq.s32.totalorder %s27, 0
      %p300 = por %p298, %p299
      %p301 = scmp.ne.s32.totalorder %s289, %s290
      %p302 = scmp.eq.s32.totalorder %s28, 1
      %p303 = por %p301, %p302
      %p305 = scmp.ne.s32.totalorder %s290, %s304
      %p306 = scmp.eq.s32.totalorder %s28, 0
      %p307 = por %p305, %p306
      %s308 = ssub.s32 %s22, %s29
      %p309 = scmp.eq.s32.totalorder %s308, 0
      %s311 = sadd.s32 %s310, 1
      %s312 = scalar_select %p309, %s310, %s311
      %p315 = pneg %p309
      %p316 = scmp.eq.s32.totalorder %s22, 1
      %p317 = por %p315, %p316
      %p318 = scmp.ne.s32.totalorder %s310, %s313
      %p319 = scmp.eq.s32.totalorder %s22, 0
      %p320 = por %p318, %p319
      %p321 = scmp.ne.s32.totalorder %s310, %s313
      %p322 = scmp.eq.s32.totalorder %s27, 1
      %p323 = por %p321, %p322
      %p324 = scmp.ne.s32.totalorder %s313, %s314
      %p325 = scmp.eq.s32.totalorder %s27, 0
      %p326 = por %p324, %p325
      %p327 = scmp.ne.s32.totalorder %s313, %s314
      %p328 = scmp.eq.s32.totalorder %s28, 1
      %p329 = por %p327, %p328
      %p331 = scmp.ne.s32.totalorder %s314, %s330
      %p332 = scmp.eq.s32.totalorder %s28, 0
      %p333 = por %p331, %p332
      %p334 = scmp.le.s32.totalorder 1, %s22
      %p335 = scmp.lt.s32.totalorder %s22, 3
      %p336 = pnand %p334, %p335
      %p337 = pneg %p336
      // Predicated region
      $region9: #{tpu_custom_call.1} parent=5 // pred_check
        _
      $region10: #{tpu_custom_call.1} parent=5 // pred_check_branch
        %339 = sbr.rel (%p336) target = $region12
      $region11: #{tpu_custom_call.1} parent=5 // pred_region
        %s340 = ssub.s32 %s22, 1
        // Predicated region
        $region13: #{tpu_custom_call.1} parent=11 // pred_check
          %p341 = pneg %p69
        $region14: #{tpu_custom_call.1} parent=11 // pred_check_branch
          %343 = sbr.rel (%p341) target = $region16
        $region15: #{tpu_custom_call.1} parent=11 // pred_region
          _
        $region16: #{tpu_custom_call.1} parent=11 // pred_fallthru
          _
        // Predicated region
        $region17: #{tpu_custom_call.1} parent=11 // pred_check
          %p344 = pneg %p90
        $region18: #{tpu_custom_call.1} parent=11 // pred_check_branch
          %346 = sbr.rel (%p344) target = $region20
        $region19: #{tpu_custom_call.1} parent=11 // pred_region
          _
        $region20: #{tpu_custom_call.1} parent=11 // pred_fallthru
          _
        // Predicated region
        $region21: #{tpu_custom_call.1} parent=11 // pred_check
          %p347 = pneg %p111
        $region22: #{tpu_custom_call.1} parent=11 // pred_check_branch
          %349 = sbr.rel (%p347) target = $region24
        $region23: #{tpu_custom_call.1} parent=11 // pred_region
          _
        $region24: #{tpu_custom_call.1} parent=11 // pred_fallthru
          _
        // Predicated region
        $region25: #{tpu_custom_call.1} parent=11 // pred_check
          %p350 = pneg %p132
        $region26: #{tpu_custom_call.1} parent=11 // pred_check_branch
          %352 = sbr.rel (%p350) target = $region28
        $region27: #{tpu_custom_call.1} parent=11 // pred_region
          _
        $region28: #{tpu_custom_call.1} parent=11 // pred_fallthru
          _
        // Predicated region
        $region29: #{tpu_custom_call.1} parent=11 // pred_check
          %p353 = pneg %p153
        $region30: #{tpu_custom_call.1} parent=11 // pred_check_branch
          %355 = sbr.rel (%p353) target = $region32
        $region31: #{tpu_custom_call.1} parent=11 // pred_region
          _
        $region32: #{tpu_custom_call.1} parent=11 // pred_fallthru
          _
        // Predicated region
        $region33: #{tpu_custom_call.1} parent=11 // pred_check
          %p356 = pneg %p174
        $region34: #{tpu_custom_call.1} parent=11 // pred_check_branch
          %358 = sbr.rel (%p356) target = $region36
        $region35: #{tpu_custom_call.1} parent=11 // pred_region
          _
        $region36: #{tpu_custom_call.1} parent=11 // pred_fallthru
          _
        // Predicated region
        $region37: #{tpu_custom_call.1} parent=11 // pred_check
          %p359 = pneg %p195
        $region38: #{tpu_custom_call.1} parent=11 // pred_check_branch
          %361 = sbr.rel (%p359) target = $region40
        $region39: #{tpu_custom_call.1} parent=11 // pred_region
          _
        $region40: #{tpu_custom_call.1} parent=11 // pred_fallthru
          _
        // Predicated region
        $region41: #{tpu_custom_call.1} parent=11 // pred_check
          %p362 = pneg %p216
        $region42: #{tpu_custom_call.1} parent=11 // pred_check_branch
          %364 = sbr.rel (%p362) target = $region44
        $region43: #{tpu_custom_call.1} parent=11 // pred_region
          _
        $region44: #{tpu_custom_call.1} parent=11 // pred_fallthru
          _
        // Predicated region
        $region45: #{tpu_custom_call.1} parent=11 // pred_check
          %p365 = pneg %p237
        $region46: #{tpu_custom_call.1} parent=11 // pred_check_branch
          %367 = sbr.rel (%p365) target = $region48
        $region47: #{tpu_custom_call.1} parent=11 // pred_region
          _
        $region48: #{tpu_custom_call.1} parent=11 // pred_fallthru
          _
        // Predicated region
        $region49: #{tpu_custom_call.1} parent=11 // pred_check
          %p368 = pneg %p258
        $region50: #{tpu_custom_call.1} parent=11 // pred_check_branch
          %370 = sbr.rel (%p368) target = $region52
        $region51: #{tpu_custom_call.1} parent=11 // pred_region
          _
        $region52: #{tpu_custom_call.1} parent=11 // pred_fallthru
          _
        // Predicated region
        $region53: #{tpu_custom_call.1} parent=11 // pred_check
          %p371 = pneg %p279
        $region54: #{tpu_custom_call.1} parent=11 // pred_check_branch
          %373 = sbr.rel (%p371) target = $region56
        $region55: #{tpu_custom_call.1} parent=11 // pred_region
          _
        $region56: #{tpu_custom_call.1} parent=11 // pred_fallthru
          _
        // Predicated region
        $region57: #{tpu_custom_call.1} parent=11 // pred_check
          %p374 = pneg %p300
        $region58: #{tpu_custom_call.1} parent=11 // pred_check_branch
          %376 = sbr.rel (%p374) target = $region60
        $region59: #{tpu_custom_call.1} parent=11 // pred_region
          _
        $region60: #{tpu_custom_call.1} parent=11 // pred_fallthru
          _
      $region12: #{tpu_custom_call.1} parent=5 // pred_fallthru
        _
      %p377 = scmp.lt.s32.totalorder %s22, 2
      // Predicated region
      $region61: #{tpu_custom_call.1} parent=5 // pred_check
        %p378 = pneg %p377
      $region62: #{tpu_custom_call.1} parent=5 // pred_check_branch
        %380 = sbr.rel (%p378) target = $region64
      $region63: #{tpu_custom_call.1} parent=5 // pred_region
        // Predicated region
        $region65: #{tpu_custom_call.1} parent=63 // pred_check
          %p381 = pneg %p42
        $region66: #{tpu_custom_call.1} parent=63 // pred_check_branch
          %383 = sbr.rel (%p381) target = $region68
        $region67: #{tpu_custom_call.1} parent=63 // pred_region
          %p384 = scmp.lt.s32.totalorder %s22, 1
          %s385 = scalar_select %p384, %s22, 1
          %s386 = smul.addr %s385, 8
          %s387 = scalar_lea.vmem %s0, %s386
        $region68: #{tpu_custom_call.1} parent=63 // pred_fallthru
          _
      $region64: #{tpu_custom_call.1} parent=5 // pred_fallthru
        _
      %p388 = scmp.le.s32.totalorder 1, %s22
      %p389 = scmp.lt.s32.totalorder %s22, 3
      %p390 = pnand %p388, %p389
      %p391 = pneg %p390
      // Predicated region
      $region69: #{tpu_custom_call.1} parent=5 // pred_check
        _
      $region70: #{tpu_custom_call.1} parent=5 // pred_check_branch
        %393 = sbr.rel (%p390) target = $region72
      $region71: #{tpu_custom_call.1} parent=5 // pred_region
        %s394 = ssub.s32 %s22, 1
        %p395 = scmp.lt.s32.totalorder %s27, 1
        %s396 = scalar_select %p395, %s27, 1
        %s397 = smul.addr %s396, 8
        %s398 = scalar_lea.vmem %s0, %s397
        %p399 = pneg %p48
        %p400 = pneg %p45
        %p401 = pneg %p69
        %p402 = pneg %p66
        %p403 = pneg %p90
        %p404 = pneg %p87
        %p405 = pneg %p111
        %p406 = pneg %p108
        %p407 = pneg %p132
        %p408 = pneg %p129
        %p409 = pneg %p153
        %p410 = pneg %p150
        %p411 = pneg %p174
        %p412 = pneg %p171
        %p413 = pneg %p195
        %p414 = pneg %p192
        %p415 = pneg %p216
        %p416 = pneg %p213
        %p417 = pneg %p237
        %p418 = pneg %p234
        %p419 = pneg %p258
        %p420 = pneg %p255
        %p421 = pneg %p279
        %p422 = pneg %p276
        %p423 = pneg %p300
        %p424 = pneg %p297
        %p425 = pneg %p326
        %p426 = pneg %p323
        %s427 = sand.u32 %s313, 1
        %s428 = scalar_lea.sflag [#allocation4], %s427
        %s429 = sand.u32 %s313, 1
        %s430 = smul.addr %s429, 8
        %s431 = scalar_lea.vmem [#allocation3], %s430
        %p432 = scmp.lt.s32.totalorder %s27, 1
        %s433 = scalar_select %p432, %s27, 1
        %s434 = smul.addr %s433, 8
        %s435 = scalar_lea.vmem %s0, %s434
        %v437 = vld [vmem:[%s1] sm:$0x1]
        %v438 = vld [vmem:[%s2] sm:$0x1]
        %v439 = vld [vmem:[%s3] sm:$0xf]
        %v440 = vld [vmem:[%s3 + $0x4] sm:$0xf]
        %v441 = vld [vmem:[%s3 + $0x8] sm:$0xf]
        %v442 = vld [vmem:[%s3 + $0xc] sm:$0xf]
        %v443 = vld [vmem:[%s3 + $0x10] sm:$0xf]
        %v444 = vld [vmem:[%s3 + $0x14] sm:$0xf]
        %v445 = vld [vmem:[%s3 + $0x18] sm:$0xf]
        %v446 = vld [vmem:[%s3 + $0x1c] sm:$0xf]
        %v447 = vld [vmem:[%s3 + $0x20] sm:$0xf]
        %v448 = vld [vmem:[%s3 + $0x24] sm:$0xf]
        %v449 = vld [vmem:[%s3 + $0x28] sm:$0xf]
        %v450 = vld [vmem:[%s3 + $0x2c] sm:$0xf]
        %v451 = vld [vmem:[%s3 + $0x30] sm:$0xf]
        %v452 = vld [vmem:[%s3 + $0x34] sm:$0xf]
        %v453 = vld [vmem:[%s3 + $0x38] sm:$0xf]
        %v454 = vld [vmem:[%s3 + $0x3c] sm:$0xf]
        %v455 = vld [vmem:[%s4] sm:$0xff]
        %v456 = vld [vmem:[%s4 + $0x8] sm:$0xff]
        %v457 = vld [vmem:[%s4 + $0x10] sm:$0xff]
        %v458 = vld [vmem:[%s4 + $0x18] sm:$0xff]
        %v459 = vld [vmem:[%s4 + $0x20] sm:$0xff]
        %v460 = vld [vmem:[%s4 + $0x28] sm:$0xff]
        %v461 = vld [vmem:[%s4 + $0x30] sm:$0xff]
        %v462 = vld [vmem:[%s4 + $0x38] sm:$0xff]
        %v463 = vld [vmem:[%s4 + $0x40] sm:$0xff]
        %v464 = vld [vmem:[%s4 + $0x48] sm:$0xff]
        %v465 = vld [vmem:[%s4 + $0x50] sm:$0xff]
        %v466 = vld [vmem:[%s4 + $0x58] sm:$0xff]
        %v467 = vld [vmem:[%s4 + $0x60] sm:$0xff]
        %v468 = vld [vmem:[%s4 + $0x68] sm:$0xff]
        %v469 = vld [vmem:[%s4 + $0x70] sm:$0xff]
        %v470 = vld [vmem:[%s4 + $0x78] sm:$0xff]
        %v471 = vld [vmem:[%s5] sm:$0xf]
        %v472 = vld [vmem:[%s6] sm:$0xff]
        %v473 = vlaneseq
        %v474 = vand.u32 %v473, 127
        %vm475 = vcmp.lt.s32.totalorder %v474, 32
        %v476 = vsel %vm475, 1, 0
        %v477 = vcvt.s32.f32 %v476
        %v478 = vld [vmem:[%s435] sm:$0xff]
        %479 = vadd.xlane.f32.xlu0 %v478
        %v480 = vpop.xlane.xlu0 %479
        %v481 = vmul.f32 %v480, 0.03125
        %v482 = vsub.f32 %v478, %v481
        %v483 = vmul.f32 %v482, %v482
        %484 = vadd.xlane.f32.xlu0 %v483
        %v485 = vpop.xlane.xlu0 %484
        %v486 = vmul.f32 %v481, %v481
        %v487 = vmul.f32 %v486, 96.0
        %v488 = vsub.f32 %v485, %v487
        %v489 = vmul.f32 %v488, 0.03125
        %v490 = vadd.f32 %v489, 1e-05
        %v491 = vrsqrt.pop %v490
        %v493 = vlaneseq
        %v494 = vshrl.u32 %v493, 7
        %v495 = vsub.s32 0, %v494
        %v496 = vrot.slane %v437, %v495
        %v498 = vmul.f32 %v491, %v496
        %v499 = vmul.f32 %v482, %v498
        %v501 = vlaneseq
        %v502 = vshrl.u32 %v501, 7
        %v503 = vsub.s32 0, %v502
        %v504 = vrot.slane %v438, %v503
        %v506 = vadd.f32 %v499, %v504
        %v507 = vpack.c.bf16 %v506, %v506
        %509 = vset.pattern.permute.xlu0 0
        %510 = vperm.xlu0 %509, %v455
        %v511 = vpop.permute.xlu0 %510
        %514 = vset.pattern.permute.xlu0 0
        %515 = vperm.xlu0 %514, %v456
        %v516 = vpop.permute.xlu0 %515
        %519 = vset.pattern.permute.xlu0 0
        %520 = vperm.xlu0 %519, %v457
        %v521 = vpop.permute.xlu0 %520
        %524 = vset.pattern.permute.xlu0 0
        %525 = vperm.xlu0 %524, %v458
        %v526 = vpop.permute.xlu0 %525
        %529 = vset.pattern.permute.xlu0 0
        %530 = vperm.xlu0 %529, %v459
        %v531 = vpop.permute.xlu0 %530
        %534 = vset.pattern.permute.xlu0 0
        %535 = vperm.xlu0 %534, %v460
        %v536 = vpop.permute.xlu0 %535
        %539 = vset.pattern.permute.xlu0 0
        %540 = vperm.xlu0 %539, %v461
        %v541 = vpop.permute.xlu0 %540
        %544 = vset.pattern.permute.xlu0 0
        %545 = vperm.xlu0 %544, %v462
        %v546 = vpop.permute.xlu0 %545
        %549 = vset.pattern.permute.xlu0 0
        %550 = vperm.xlu0 %549, %v463
        %v551 = vpop.permute.xlu0 %550
        %554 = vset.pattern.permute.xlu0 0
        %555 = vperm.xlu0 %554, %v464
        %v556 = vpop.permute.xlu0 %555
        %559 = vset.pattern.permute.xlu0 0
        %560 = vperm.xlu0 %559, %v465
        %v561 = vpop.permute.xlu0 %560
        %564 = vset.pattern.permute.xlu0 0
        %565 = vperm.xlu0 %564, %v466
        %v566 = vpop.permute.xlu0 %565
        %569 = vset.pattern.permute.xlu0 0
        %570 = vperm.xlu0 %569, %v467
        %v571 = vpop.permute.xlu0 %570
        %574 = vset.pattern.permute.xlu0 0
        %575 = vperm.xlu0 %574, %v468
        %v576 = vpop.permute.xlu0 %575
        %579 = vset.pattern.permute.xlu0 0
        %580 = vperm.xlu0 %579, %v469
        %v581 = vpop.permute.xlu0 %580
        %584 = vset.pattern.permute.xlu0 0
        %585 = vperm.xlu0 %584, %v470
        %v586 = vpop.permute.xlu0 %585
        %v604 = vunpack.c.l.b16 %v439
        %v605 = vunpack.c.l.b16 %v440
        %v606 = vunpack.c.l.b16 %v441
        %v607 = vunpack.c.l.b16 %v442
        %v608 = vunpack.c.l.b16 %v443
        %v609 = vunpack.c.l.b16 %v444
        %v610 = vunpack.c.l.b16 %v445
        %v611 = vunpack.c.l.b16 %v446
        %v612 = vunpack.c.l.b16 %v447
        %v613 = vunpack.c.l.b16 %v448
        %v614 = vunpack.c.l.b16 %v449
        %v615 = vunpack.c.l.b16 %v450
        %v616 = vunpack.c.l.b16 %v451
        %v617 = vunpack.c.l.b16 %v452
        %v618 = vunpack.c.l.b16 %v453
        %v619 = vunpack.c.l.b16 %v454
        %v620 = vpack.c.b16 %v605, %v604
        %v621 = vpack.c.b16 %v607, %v606
        %v622 = vpack.c.b16 %v609, %v608
        %v623 = vpack.c.b16 %v611, %v610
        %v624 = vpack.c.b16 %v613, %v612
        %v625 = vpack.c.b16 %v615, %v614
        %v626 = vpack.c.b16 %v617, %v616
        %v627 = vpack.c.b16 %v619, %v618
        %vm628 = vcmask 64512
        %v630 = vsel %vm628, %v620, 0
        %v633 = vsel %vm628, %v621, 0
        %v636 = vsel %vm628, %v622, 0
        %v639 = vsel %vm628, %v623, 0
        %v642 = vsel %vm628, %v624, 0
        %v645 = vsel %vm628, %v625, 0
        %v648 = vsel %vm628, %v626, 0
        %v651 = vsel %vm628, %v627, 0
        %vm653 = vcmask 1043456
        %v655 = vsel %vm653, %v507, 0
        %657 = vmatprep.subr.bf16.mxu0 0
        %658 = vmatpush1.bf16.msra.mxu0 %v655
        %659 = vmatprep.subr.bf16.mxu0 0
        %660 = vmatpush1.bf16.msra.mxu0 0
        %661 = vmatprep.subr.bf16.mxu0 0
        %662 = vmatpush1.bf16.msra.mxu0 0
        %663 = vmatprep.subr.bf16.mxu0 0
        %664 = vmatpush1.bf16.msra.mxu0 0
        %665 = vmatprep.subr.bf16.mxu0 0
        %666 = vmatpush1.bf16.msra.mxu0 0
        %667 = vmatprep.subr.bf16.mxu0 0
        %668 = vmatpush1.bf16.msra.mxu0 0
        %669 = vmatprep.subr.bf16.mxu0 0
        %670 = vmatpush1.bf16.msra.mxu0 0
        %671 = vmatprep.subr.bf16.mxu0 0
        %672 = vmatpush1.bf16.msra.mxu0 0
        %673 = vmatprep.subr.bf16.mxu0 0
        %674 = vmatpush1.bf16.msra.mxu0 0
        %675 = vmatprep.subr.bf16.mxu0 0
        %676 = vmatpush1.bf16.msra.mxu0 0
        %677 = vmatprep.subr.bf16.mxu0 0
        %678 = vmatpush1.bf16.msra.mxu0 0
        %679 = vmatprep.subr.bf16.mxu0 0
        %680 = vmatpush1.bf16.msra.mxu0 0
        %681 = vmatprep.subr.bf16.mxu0 0
        %682 = vmatpush1.bf16.msra.mxu0 0
        %683 = vmatprep.subr.bf16.mxu0 0
        %684 = vmatpush1.bf16.msra.mxu0 0
        %685 = vmatprep.subr.bf16.mxu0 0
        %686 = vmatpush1.bf16.msra.mxu0 0
        %687 = vmatprep.subr.bf16.mxu0 0
        %688 = vmatpush1.bf16.msra.mxu0 0
        %689 = vmatprep.mubr.bf16.mxu0 0
        %690 = vmatmul.mubr.bf16.gmra.mrb[0].mxu0 %v630
        %v691 = vpop.f32.mrb[0].mxu0
        %v692 = vadd.f32 %v511, %v691
        %v693 = vpop.f32.mrb[0].mxu0
        %v694 = vpop.f32.mrb[0].mxu0
        %v695 = vadd.f32 %v516, %v694
        %v696 = vpop.f32.mrb[0].mxu0
        %697 = vmatprep.mubr.bf16.mxu0 0
        %698 = vmatmul.mubr.bf16.gmra.mrb[0].mxu0 %v633
        %v699 = vpop.f32.mrb[0].mxu0
        %v700 = vadd.f32 %v521, %v699
        %v701 = vpop.f32.mrb[0].mxu0
        %v702 = vpop.f32.mrb[0].mxu0
        %v703 = vadd.f32 %v526, %v702
        %v704 = vpop.f32.mrb[0].mxu0
        %705 = vmatprep.mubr.bf16.mxu0 0
        %706 = vmatmul.mubr.bf16.gmra.mrb[0].mxu0 %v636
        %v707 = vpop.f32.mrb[0].mxu0
        %v708 = vadd.f32 %v531, %v707
        %v709 = vpop.f32.mrb[0].mxu0
        %v710 = vpop.f32.mrb[0].mxu0
        %v711 = vadd.f32 %v536, %v710
        %v712 = vpop.f32.mrb[0].mxu0
        %713 = vmatprep.mubr.bf16.mxu0 0
        %714 = vmatmul.mubr.bf16.gmra.mrb[0].mxu0 %v639
        %v715 = vpop.f32.mrb[0].mxu0
        %v716 = vadd.f32 %v541, %v715
        %v717 = vpop.f32.mrb[0].mxu0
        %v718 = vpop.f32.mrb[0].mxu0
        %v719 = vadd.f32 %v546, %v718
        %v720 = vpop.f32.mrb[0].mxu0
        %721 = vmatprep.mubr.bf16.mxu0 0
        %722 = vmatmul.mubr.bf16.gmra.mrb[0].mxu0 %v642
        %v723 = vpop.f32.mrb[0].mxu0
        %v724 = vadd.f32 %v551, %v723
        %v725 = vpop.f32.mrb[0].mxu0
        %v726 = vpop.f32.mrb[0].mxu0
        %v727 = vadd.f32 %v556, %v726
        %v728 = vpop.f32.mrb[0].mxu0
        %729 = vmatprep.mubr.bf16.mxu0 0
        %730 = vmatmul.mubr.bf16.gmra.mrb[0].mxu0 %v645
        %v731 = vpop.f32.mrb[0].mxu0
        %v732 = vadd.f32 %v561, %v731
        %v733 = vpop.f32.mrb[0].mxu0
        %v734 = vpop.f32.mrb[0].mxu0
        %v735 = vadd.f32 %v566, %v734
        %v736 = vpop.f32.mrb[0].mxu0
        %737 = vmatprep.mubr.bf16.mxu0 0
        %738 = vmatmul.mubr.bf16.gmra.mrb[0].mxu0 %v648
        %v739 = vpop.f32.mrb[0].mxu0
        %v740 = vadd.f32 %v571, %v739
        %v741 = vpop.f32.mrb[0].mxu0
        %v742 = vpop.f32.mrb[0].mxu0
        %v743 = vadd.f32 %v576, %v742
        %v744 = vpop.f32.mrb[0].mxu0
        %745 = vmatprep.mubr.bf16.mxu0 0
        %746 = vmatmul.mubr.bf16.gmra.mrb[0].mxu0 %v651
        %v747 = vpop.f32.mrb[0].mxu0
        %v748 = vadd.f32 %v581, %v747
        %v749 = vpop.f32.mrb[0].mxu0
        %v750 = vpop.f32.mrb[0].mxu0
        %v751 = vadd.f32 %v586, %v750
        %v752 = vpop.f32.mrb[0].mxu0
        %753 = vdwg.mxu0
        %v754 = vmul.f32 %v692, 0.5
        %v755 = vmul.f32 %v695, 0.5
        %v756 = vmul.f32 %v700, 0.5
        %v757 = vmul.f32 %v703, 0.5
        %v758 = vmul.f32 %v708, 0.5
        %v759 = vmul.f32 %v711, 0.5
        %v760 = vmul.f32 %v716, 0.5
        %v761 = vmul.f32 %v719, 0.5
        %v762 = vmul.f32 %v724, 0.5
        %v763 = vmul.f32 %v727, 0.5
        %v764 = vmul.f32 %v732, 0.5
        %v765 = vmul.f32 %v735, 0.5
        %v766 = vmul.f32 %v740, 0.5
        %v767 = vmul.f32 %v743, 0.5
        %v768 = vmul.f32 %v748, 0.5
        %v769 = vmul.f32 %v751, 0.5
        %v770 = vmul.f32 %v692, 0.70710677
        %v771 = vmul.f32 %v695, 0.70710677
        %v772 = vmul.f32 %v700, 0.70710677
        %v773 = vmul.f32 %v703, 0.70710677
        %v774 = vmul.f32 %v708, 0.70710677
        %v775 = vmul.f32 %v711, 0.70710677
        %v776 = vmul.f32 %v716, 0.70710677
        %v777 = vmul.f32 %v719, 0.70710677
        %v778 = vmul.f32 %v724, 0.70710677
        %v779 = vmul.f32 %v727, 0.70710677
        %v780 = vmul.f32 %v732, 0.70710677
        %v781 = vmul.f32 %v735, 0.70710677
        %v782 = vmul.f32 %v740, 0.70710677
        %v783 = vmul.f32 %v743, 0.70710677
        %v784 = vmul.f32 %v748, 0.70710677
        %v785 = vmul.f32 %v751, 0.70710677
        %v786 = verf.f32.pop %v770
        %v787 = verf.f32.pop %v771
        %v788 = verf.f32.pop %v772
        %v789 = verf.f32.pop %v773
        %v790 = verf.f32.pop %v774
        %v791 = verf.f32.pop %v775
        %v792 = verf.f32.pop %v776
        %v793 = verf.f32.pop %v777
        %v794 = verf.f32.pop %v778
        %v795 = verf.f32.pop %v779
        %v796 = verf.f32.pop %v780
        %v797 = verf.f32.pop %v781
        %v798 = verf.f32.pop %v782
        %v799 = verf.f32.pop %v783
        %v800 = verf.f32.pop %v784
        %v801 = verf.f32.pop %v785
        %v802 = vadd.f32 %v786, 1.0
        %v803 = vadd.f32 %v787, 1.0
        %v804 = vadd.f32 %v788, 1.0
        %v805 = vadd.f32 %v789, 1.0
        %v806 = vadd.f32 %v790, 1.0
        %v807 = vadd.f32 %v791, 1.0
        %v808 = vadd.f32 %v792, 1.0
        %v809 = vadd.f32 %v793, 1.0
        %v810 = vadd.f32 %v794, 1.0
        %v811 = vadd.f32 %v795, 1.0
        %v812 = vadd.f32 %v796, 1.0
        %v813 = vadd.f32 %v797, 1.0
        %v814 = vadd.f32 %v798, 1.0
        %v815 = vadd.f32 %v799, 1.0
        %v816 = vadd.f32 %v800, 1.0
        %v817 = vadd.f32 %v801, 1.0
        %v818 = vmul.f32 %v754, %v802
        %v819 = vmul.f32 %v755, %v803
        %v820 = vmul.f32 %v756, %v804
        %v821 = vmul.f32 %v757, %v805
        %v822 = vmul.f32 %v758, %v806
        %v823 = vmul.f32 %v759, %v807
        %v824 = vmul.f32 %v760, %v808
        %v825 = vmul.f32 %v761, %v809
        %v826 = vmul.f32 %v762, %v810
        %v827 = vmul.f32 %v763, %v811
        %v828 = vmul.f32 %v764, %v812
        %v829 = vmul.f32 %v765, %v813
        %v830 = vmul.f32 %v766, %v814
        %v831 = vmul.f32 %v767, %v815
        %v832 = vmul.f32 %v768, %v816
        %v833 = vmul.f32 %v769, %v817
        %v834 = vpack.c.bf16 %v819, %v818
        %v835 = vpack.c.bf16 %v821, %v820
        %v836 = vpack.c.bf16 %v823, %v822
        %v837 = vpack.c.bf16 %v825, %v824
        %v838 = vpack.c.bf16 %v827, %v826
        %v839 = vpack.c.bf16 %v829, %v828
        %v840 = vpack.c.bf16 %v831, %v830
        %v841 = vpack.c.bf16 %v833, %v832
        %843 = vset.pattern.permute.xlu0 0
        %844 = vperm.xlu0 %843, %v472
        %v845 = vpop.permute.xlu0 %844
        %847 = vmatprep.subr.bf16.mxu0 0
        %848 = vmatpush1.bf16.msra.mxu0 %v834
        %849 = vmatprep.subr.bf16.mxu0 0
        %850 = vmatpush1.bf16.msra.mxu0 %v835
        %851 = vmatprep.subr.bf16.mxu0 0
        %852 = vmatpush1.bf16.msra.mxu0 %v836
        %853 = vmatprep.subr.bf16.mxu0 0
        %854 = vmatpush1.bf16.msra.mxu0 %v837
        %855 = vmatprep.subr.bf16.mxu0 0
        %856 = vmatpush1.bf16.msra.mxu0 %v838
        %857 = vmatprep.subr.bf16.mxu0 0
        %858 = vmatpush1.bf16.msra.mxu0 %v839
        %859 = vmatprep.subr.bf16.mxu0 0
        %860 = vmatpush1.bf16.msra.mxu0 %v840
        %861 = vmatprep.subr.bf16.mxu0 0
        %862 = vmatpush1.bf16.msra.mxu0 %v841
        %863 = vmatprep.subr.bf16.mxu0 0
        %864 = vmatpush1.bf16.msra.mxu0 0
        %865 = vmatprep.subr.bf16.mxu0 0
        %866 = vmatpush1.bf16.msra.mxu0 0
        %867 = vmatprep.subr.bf16.mxu0 0
        %868 = vmatpush1.bf16.msra.mxu0 0
        %869 = vmatprep.subr.bf16.mxu0 0
        %870 = vmatpush1.bf16.msra.mxu0 0
        %871 = vmatprep.subr.bf16.mxu0 0
        %872 = vmatpush1.bf16.msra.mxu0 0
        %873 = vmatprep.subr.bf16.mxu0 0
        %874 = vmatpush1.bf16.msra.mxu0 0
        %875 = vmatprep.subr.bf16.mxu0 0
        %876 = vmatpush1.bf16.msra.mxu0 0
        %877 = vmatprep.subr.bf16.mxu0 0
        %878 = vmatpush1.bf16.msra.mxu0 0
        %879 = vmatprep.mubr.bf16.mxu0 0
        %880 = vmatmul.mubr.bf16.gmra.mrb[0].mxu0 %v471
        %v881 = vpop.f32.mrb[0].mxu0
        %v882 = vadd.f32 %v845, %v881
        %v883 = vpop.f32.mrb[0].mxu0
        %v884 = vpop.f32.mrb[0].mxu0
        %v885 = vpop.f32.mrb[0].mxu0
        %886 = vdwg.mxu0
        %v887 = vmul.f32 %v882, %v477
        %v888 = vadd.f32 %v478, %v887
        %889 = vst [vmem:[#allocation2] sm:$0xff] %v888
        %v890 = vld [vmem:[#allocation2] sm:$0xff]
        %v891 = vld [vmem:[%s7] sm:$0x1]
        %v892 = vld [vmem:[%s8] sm:$0x1]
        %893 = vadd.xlane.f32.xlu0 %v890
        %v894 = vpop.xlane.xlu0 %893
        %v895 = vmul.f32 %v894, 0.03125
        %v896 = vsub.f32 %v890, %v895
        %v897 = vmul.f32 %v896, %v896
        %898 = vadd.xlane.f32.xlu0 %v897
        %v899 = vpop.xlane.xlu0 %898
        %v900 = vmul.f32 %v895, %v895
        %v901 = vmul.f32 %v900, 96.0
        %v902 = vsub.f32 %v899, %v901
        %v903 = vmul.f32 %v902, 0.03125
        %v904 = vadd.f32 %v903, 1e-05
        %v905 = vrsqrt.pop %v904
        %v907 = vlaneseq
        %v908 = vshrl.u32 %v907, 7
        %v909 = vsub.s32 0, %v908
        %v910 = vrot.slane %v891, %v909
        %v912 = vmul.f32 %v905, %v910
        %v913 = vmul.f32 %v896, %v912
        %v915 = vlaneseq
        %v916 = vshrl.u32 %v915, 7
        %v917 = vsub.s32 0, %v916
        %v918 = vrot.slane %v892, %v917
        %v920 = vadd.f32 %v913, %v918
        %v921 = vpack.c.bf16 %v920, %v920
        %v922 = vld [vmem:[%s9] sm:$0xf]
        %v923 = vld [vmem:[%s9 + $0x4] sm:$0xf]
        %v924 = vld [vmem:[%s9 + $0x8] sm:$0xf]
        %v925 = vld [vmem:[%s9 + $0xc] sm:$0xf]
        %v926 = vld [vmem:[%s9 + $0x10] sm:$0xf]
        %v927 = vld [vmem:[%s9 + $0x14] sm:$0xf]
        %v928 = vld [vmem:[%s9 + $0x18] sm:$0xf]
        %v929 = vld [vmem:[%s9 + $0x1c] sm:$0xf]
        %v930 = vld [vmem:[%s9 + $0x20] sm:$0xf]
        %v931 = vld [vmem:[%s9 + $0x24] sm:$0xf]
        %v932 = vld [vmem:[%s9 + $0x28] sm:$0xf]
        %v933 = vld [vmem:[%s9 + $0x2c] sm:$0xf]
        %v934 = vld [vmem:[%s9 + $0x30] sm:$0xf]
        %v935 = vld [vmem:[%s9 + $0x34] sm:$0xf]
        %v936 = vld [vmem:[%s9 + $0x38] sm:$0xf]
        %v937 = vld [vmem:[%s9 + $0x3c] sm:$0xf]
        %v938 = vld [vmem:[%s10] sm:$0x1]
        %v940 = vlaneseq
        %v941 = vshrl.u32 %v940, 7
        %v942 = vsub.s32 0, %v941
        %v943 = vrot.slane %v938, %v942
        %v961 = vunpack.c.l.b16 %v922
        %v962 = vunpack.c.l.b16 %v923
        %v963 = vunpack.c.l.b16 %v924
        %v964 = vunpack.c.l.b16 %v925
        %v965 = vunpack.c.l.b16 %v926
        %v966 = vunpack.c.l.b16 %v927
        %v967 = vunpack.c.l.b16 %v928
        %v968 = vunpack.c.l.b16 %v929
        %v969 = vunpack.c.l.b16 %v930
        %v970 = vunpack.c.l.b16 %v931
        %v971 = vunpack.c.l.b16 %v932
        %v972 = vunpack.c.l.b16 %v933
        %v973 = vunpack.c.l.b16 %v934
        %v974 = vunpack.c.l.b16 %v935
        %v975 = vunpack.c.l.b16 %v936
        %v976 = vunpack.c.l.b16 %v937
        %v977 = vpack.c.b16 %v962, %v961
        %v978 = vpack.c.b16 %v964, %v963
        %v979 = vpack.c.b16 %v966, %v965
        %v980 = vpack.c.b16 %v968, %v967
        %v981 = vpack.c.b16 %v970, %v969
        %v982 = vpack.c.b16 %v972, %v971
        %v983 = vpack.c.b16 %v974, %v973
        %v984 = vpack.c.b16 %v976, %v975
        %993 = vmatprep.subr.bf16.mxu0 0
        %994 = vmatpush1.bf16.msra.mxu0 %v977
        %995 = vmatprep.subr.bf16.mxu0 0
        %996 = vmatpush1.bf16.msra.mxu0 %v978
        %997 = vmatprep.subr.bf16.mxu0 0
        %998 = vmatpush1.bf16.msra.mxu0 %v979
        %999 = vmatprep.subr.bf16.mxu0 0
        %1000 = vmatpush1.bf16.msra.mxu0 %v980
        %1001 = vmatprep.subr.bf16.mxu0 0
        %1002 = vmatpush1.bf16.msra.mxu0 %v981
        %1003 = vmatprep.subr.bf16.mxu0 0
        %1004 = vmatpush1.bf16.msra.mxu0 %v982
        %1005 = vmatprep.subr.bf16.mxu0 0
        %1006 = vmatpush1.bf16.msra.mxu0 %v983
        %1007 = vmatprep.subr.bf16.mxu0 0
        %1008 = vmatpush1.bf16.msra.mxu0 %v984
        %1009 = vmatprep.subr.bf16.mxu0 0
        %1010 = vmatpush1.bf16.msra.mxu0 0
        %1011 = vmatprep.subr.bf16.mxu0 0
        %1012 = vmatpush1.bf16.msra.mxu0 0
        %1013 = vmatprep.subr.bf16.mxu0 0
        %1014 = vmatpush1.bf16.msra.mxu0 0
        %1015 = vmatprep.subr.bf16.mxu0 0
        %1016 = vmatpush1.bf16.msra.mxu0 0
        %1017 = vmatprep.subr.bf16.mxu0 0
        %1018 = vmatpush1.bf16.msra.mxu0 0
        %1019 = vmatprep.subr.bf16.mxu0 0
        %1020 = vmatpush1.bf16.msra.mxu0 0
        %1021 = vmatprep.subr.bf16.mxu0 0
        %1022 = vmatpush1.bf16.msra.mxu0 0
        %1023 = vmatprep.subr.bf16.mxu0 0
        %1024 = vmatpush1.bf16.msra.mxu0 0
        %1025 = vmatprep.mubr.bf16.mxu0 0
        %1026 = vmatmul.mubr.bf16.gmra.mrb[0].mxu0 %v921
        %v1027 = vpop.f32.mrb[0].mxu0
        %v1028 = vadd.f32 %v943, %v1027
        %v1029 = vpop.f32.mrb[0].mxu0
        %v1030 = vpop.f32.mrb[0].mxu0
        %v1031 = vpop.f32.mrb[0].mxu0
        %1032 = vdwg.mxu0
        %v1033 = vmul.f32 %v1028, 0.5
        %v1034 = vmul.f32 %v1028, 0.70710677
        %v1035 = verf.f32.pop %v1034
        %v1036 = vadd.f32 %v1035, 1.0
        %v1037 = vmul.f32 %v1033, %v1036
        %v1038 = vpack.c.bf16 %v1037, %v1037
        %v1039 = vld [vmem:[%s11] sm:$0xf]
        %v1040 = vld [vmem:[%s11 + $0x4] sm:$0xf]
        %v1041 = vld [vmem:[%s11 + $0x8] sm:$0xf]
        %v1042 = vld [vmem:[%s11 + $0xc] sm:$0xf]
        %v1043 = vld [vmem:[%s11 + $0x10] sm:$0xf]
        %v1044 = vld [vmem:[%s11 + $0x14] sm:$0xf]
        %v1045 = vld [vmem:[%s11 + $0x18] sm:$0xf]
        %v1046 = vld [vmem:[%s11 + $0x1c] sm:$0xf]
        %v1047 = vld [vmem:[%s11 + $0x20] sm:$0xf]
        %v1048 = vld [vmem:[%s11 + $0x24] sm:$0xf]
        %v1049 = vld [vmem:[%s11 + $0x28] sm:$0xf]
        %v1050 = vld [vmem:[%s11 + $0x2c] sm:$0xf]
        %v1051 = vld [vmem:[%s11 + $0x30] sm:$0xf]
        %v1052 = vld [vmem:[%s11 + $0x34] sm:$0xf]
        %v1053 = vld [vmem:[%s11 + $0x38] sm:$0xf]
        %v1054 = vld [vmem:[%s11 + $0x3c] sm:$0xf]
        %v1055 = vld [vmem:[%s12] sm:$0x1]
        %v1057 = vlaneseq
        %v1058 = vshrl.u32 %v1057, 7
        %v1059 = vsub.s32 0, %v1058
        %v1060 = vrot.slane %v1055, %v1059
        %v1078 = vunpack.c.l.b16 %v1039
        %v1079 = vunpack.c.l.b16 %v1040
        %v1080 = vunpack.c.l.b16 %v1041
        %v1081 = vunpack.c.l.b16 %v1042
        %v1082 = vunpack.c.l.b16 %v1043
        %v1083 = vunpack.c.l.b16 %v1044
        %v1084 = vunpack.c.l.b16 %v1045
        %v1085 = vunpack.c.l.b16 %v1046
        %v1086 = vunpack.c.l.b16 %v1047
        %v1087 = vunpack.c.l.b16 %v1048
        %v1088 = vunpack.c.l.b16 %v1049
        %v1089 = vunpack.c.l.b16 %v1050
        %v1090 = vunpack.c.l.b16 %v1051
        %v1091 = vunpack.c.l.b16 %v1052
        %v1092 = vunpack.c.l.b16 %v1053
        %v1093 = vunpack.c.l.b16 %v1054
        %v1094 = vpack.c.b16 %v1079, %v1078
        %v1095 = vpack.c.b16 %v1081, %v1080
        %v1096 = vpack.c.b16 %v1083, %v1082
        %v1097 = vpack.c.b16 %v1085, %v1084
        %v1098 = vpack.c.b16 %v1087, %v1086
        %v1099 = vpack.c.b16 %v1089, %v1088
        %v1100 = vpack.c.b16 %v1091, %v1090
        %v1101 = vpack.c.b16 %v1093, %v1092
        %1110 = vmatprep.subr.bf16.mxu0 0
        %1111 = vmatpush1.bf16.msra.mxu0 %v1094
        %1112 = vmatprep.subr.bf16.mxu0 0
        %1113 = vmatpush1.bf16.msra.mxu0 %v1095
        %1114 = vmatprep.subr.bf16.mxu0 0
        %1115 = vmatpush1.bf16.msra.mxu0 %v1096
        %1116 = vmatprep.subr.bf16.mxu0 0
        %1117 = vmatpush1.bf16.msra.mxu0 %v1097
        %1118 = vmatprep.subr.bf16.mxu0 0
        %1119 = vmatpush1.bf16.msra.mxu0 %v1098
        %1120 = vmatprep.subr.bf16.mxu0 0
        %1121 = vmatpush1.bf16.msra.mxu0 %v1099
        %1122 = vmatprep.subr.bf16.mxu0 0
        %1123 = vmatpush1.bf16.msra.mxu0 %v1100
        %1124 = vmatprep.subr.bf16.mxu0 0
        %1125 = vmatpush1.bf16.msra.mxu0 %v1101
        %1126 = vmatprep.subr.bf16.mxu0 0
        %1127 = vmatpush1.bf16.msra.mxu0 0
        %1128 = vmatprep.subr.bf16.mxu0 0
        %1129 = vmatpush1.bf16.msra.mxu0 0
        %1130 = vmatprep.subr.bf16.mxu0 0
        %1131 = vmatpush1.bf16.msra.mxu0 0
        %1132 = vmatprep.subr.bf16.mxu0 0
        %1133 = vmatpush1.bf16.msra.mxu0 0
        %1134 = vmatprep.subr.bf16.mxu0 0
        %1135 = vmatpush1.bf16.msra.mxu0 0
        %1136 = vmatprep.subr.bf16.mxu0 0
        %1137 = vmatpush1.bf16.msra.mxu0 0
        %1138 = vmatprep.subr.bf16.mxu0 0
        %1139 = vmatpush1.bf16.msra.mxu0 0
        %1140 = vmatprep.subr.bf16.mxu0 0
        %1141 = vmatpush1.bf16.msra.mxu0 0
        %1142 = vmatprep.mubr.bf16.mxu0 0
        %1143 = vmatmul.mubr.bf16.gmra.mrb[0].mxu0 %v1038
        %v1144 = vpop.f32.mrb[0].mxu0
        %v1145 = vadd.f32 %v1060, %v1144
        %v1146 = vpop.f32.mrb[0].mxu0
        %v1147 = vpop.f32.mrb[0].mxu0
        %v1148 = vpop.f32.mrb[0].mxu0
        %1149 = vdwg.mxu0
        %v1150 = vadd.f32 %v890, %v1145
        %1151 = vst [vmem:[%s431] sm:$0xff] %v1150
        %s1152 = sand.u32 %s313, 1
        %s1153 = scalar_lea.sflag [#allocation4], %s1152
        %s1154 = sand.u32 %s313, 1
        %s1155 = smul.addr %s1154, 8
        %s1156 = scalar_lea.vmem [#allocation3], %s1155
        // Predicated region
        $region73: #{tpu_custom_call.1} parent=71 // pred_check
          %p1157 = pneg %p323
        $region74: #{tpu_custom_call.1} parent=71 // pred_check_branch
          %1159 = sbr.rel (%p1157) target = $region76
        $region75: #{tpu_custom_call.1} parent=71 // pred_region
          %s1161 = ssub.s32 128, 128
          %1162 = vsyncadd %s1153, %s1161
          %s1163 = smul.addr %s27, 128
          %s1164 = scalar_lea.hbm %s13, %s1163
          %s1166 = sshll.u32 %s1156, 4
          %s1167 = int_to_ptr.vmem [resolvable:$true] %s1166
          %1169 = dma.vmem_to_hbm [thread:$0]  %s1167, 128, %s1164, %s1153
        $region76: #{tpu_custom_call.1} parent=71 // pred_fallthru
          _
      $region72: #{tpu_custom_call.1} parent=5 // pred_fallthru
        _
      %p1170 = scmp.le.s32.totalorder 2, %s22
      // Predicated region
      $region77: #{tpu_custom_call.1} parent=5 // pred_check
        %p1171 = pneg %p1170
      $region78: #{tpu_custom_call.1} parent=5 // pred_check_branch
        %1173 = sbr.rel (%p1171) target = $region80
      $region79: #{tpu_custom_call.1} parent=5 // pred_region
        %s1174 = ssub.s32 %s22, 2
        // Predicated region
        $region81: #{tpu_custom_call.1} parent=79 // pred_check
          %p1175 = pneg %p329
        $region82: #{tpu_custom_call.1} parent=79 // pred_check_branch
          %1177 = sbr.rel (%p1175) target = $region84
        $region83: #{tpu_custom_call.1} parent=79 // pred_region
          %s1178 = sand.u32 %s314, 1
          %s1179 = scalar_lea.sflag [#allocation4], %s1178
          %s1180 = sand.u32 %s314, 1
          %s1181 = smul.addr %s1180, 8
          %s1182 = scalar_lea.vmem [#allocation3], %s1181
          %1183 = dma.done %s1179, 128
        $region84: #{tpu_custom_call.1} parent=79 // pred_fallthru
          _
      $region80: #{tpu_custom_call.1} parent=5 // pred_fallthru
        _
    $region6: #{tpu_custom_call.1} parent=1 // loop_footer
      %s26 = sadd.s32 1, %s22
    $region7: #{tpu_custom_call.1} parent=1 // loop_footer_branch
      %21 = sbr.rel target = $region3
    $region8: #{tpu_custom_call.1} parent=1 // loop_exit
      _
    %1184 = vsyncpa [#allocation4], 1
    %s1185 = scalar_lea.sflag [#allocation4], 1
    %1186 = vsyncpa %s1185, 1

</llo_original>
